<compile_context>
chip_gen: v6e
topology: v6e:2x2x1
jax: 0.10.0
libtpu: 0.0.40
codegen_flags: <defaults>
</compile_context>

<pallas_src>
import functools

import jax
import jax.numpy as jnp
from jax.experimental import pallas as pl
from jax.experimental.pallas import tpu as pltpu


# ----------------------------- Pallas kernel ------------------------------ #
def _mha_kernel(*refs, num_heads, head_dim, self_attn):
    if self_attn:
        (x_ref, wqkv_ref, bqkv_ref, wo_ref, bo_ref, out_ref, attn_ref) = refs
        bb, Sq, E = x_ref.shape
        Sk = Sq
    else:
        (q_ref, k_ref, v_ref, wqkv_ref, bqkv_ref, wo_ref, bo_ref,
         out_ref, attn_ref) = refs
        bb, Sq, E = q_ref.shape
        Sk = k_ref.shape[1]

    H, D = num_heads, head_dim
    Mq = bb * Sq
    Mk = bb * Sk

    w = wqkv_ref[...]            # (E, 3E) bf16, resident
    b = bqkv_ref[...]            # (1, 3E) f32 (scale already folded into Q part)

    if self_attn:
        # Single fused projection: (Mq, E) x (E, 3E) -> (Mq, 3E).
        x = x_ref[...].reshape(Mq, E).astype(jnp.bfloat16)
        qkv = jnp.dot(x, w, preferred_element_type=jnp.float32) + b
        q = qkv[:, 0 * E:1 * E]
        k = qkv[:, 1 * E:2 * E]
        v = qkv[:, 2 * E:3 * E]
    else:
        # Three full-row matmuls against column slices of the fused weight.
        xq = q_ref[...].reshape(Mq, E).astype(jnp.bfloat16)
        xk = k_ref[...].reshape(Mk, E).astype(jnp.bfloat16)
        xv = v_ref[...].reshape(Mk, E).astype(jnp.bfloat16)
        q = jnp.dot(xq, w[:, 0 * E:1 * E], preferred_element_type=jnp.float32) + b[:, 0 * E:1 * E]
        k = jnp.dot(xk, w[:, 1 * E:2 * E], preferred_element_type=jnp.float32) + b[:, 1 * E:2 * E]
        v = jnp.dot(xv, w[:, 2 * E:3 * E], preferred_element_type=jnp.float32) + b[:, 2 * E:3 * E]

    wo = wo_ref[...]             # (E, E) bf16, resident
    bo = bo_ref[...]             # (1, E) f32

    # Static unroll over batch rows in this block (bb == 1 for realistic
    # large-S workloads); everything is stored as soon as it is produced.
    for i in range(bb):
        qi = q[i * Sq:(i + 1) * Sq, :]            # (Sq, E) sublane slices
        ki = k[i * Sk:(i + 1) * Sk, :]
        vi = v[i * Sk:(i + 1) * Sk, :]

        # Head split -> (H, S, D): heads become the leading batch dim so the
        # score/context matmuls are single batched dot_generals.
        qh = jnp.stack([qi[:, h * D:(h + 1) * D] for h in range(H)], axis=0).astype(jnp.bfloat16)
        kh = jnp.stack([ki[:, h * D:(h + 1) * D] for h in range(H)], axis=0).astype(jnp.bfloat16)
        vh = jnp.stack([vi[:, h * D:(h + 1) * D] for h in range(H)], axis=0).astype(jnp.bfloat16)

        # Scores (scale folded into W_q) + softmax.
        s = jnp.einsum('hqd,hkd->hqk', qh, kh,
                       preferred_element_type=jnp.float32)          # (H, Sq, Sk)
        m = jnp.max(s, axis=-1, keepdims=True)
        e = jnp.exp(s - m)
        denom = jnp.sum(e, axis=-1, keepdims=True)
        p = e * pl.reciprocal(denom, approx=True)                   # EUP reciprocal

        # One full-slab store per batch row (no lists / final stack).
        attn_ref[i] = p

        ctx = jnp.einsum('hqk,hkd->hqd', p.astype(jnp.bfloat16), vh,
                         preferred_element_type=jnp.float32)        # (H, Sq, D)

        # Output projection with the head merge folded into the contraction:
        # out = sum_h ctx[h] @ Wo[h*D:(h+1)*D, :]  (no lane concatenations).
        acc = None
        for h in range(H):
            part = jnp.dot(ctx[h].astype(jnp.bfloat16),
                           wo[h * D:(h + 1) * D, :],
                           preferred_element_type=jnp.float32)      # (Sq, E)
            acc = part if acc is None else acc + part
        out_ref[i] = acc + bo


# ------------------------------- Wrapper ---------------------------------- #
def _pick_block_b(B, S):
    """Batch block size: target ~256 matmul rows (v6e/v7x MXU width), keep
    >=2 grid steps when possible so both v7x TensorCores get work."""
    target = max(1, 256 // max(S, 1))
    if B >= 2:
        target = max(1, min(target, B // 2))
    bb = 1
    for cand in range(1, min(B, target) + 1):
        if B % cand == 0:
            bb = cand
    return bb


def _estimate_vmem_bytes(block_b, Sq, Sk, E, H, n_seq_inputs):
    """Rough per-step VMEM footprint: double-buffered IO blocks + resident
    (double-buffered) weights + the main in-kernel intermediates."""
    f32, bf16 = 4, 2
    io = 2 * (n_seq_inputs * block_b * max(Sq, Sk) * E * f32     # seq inputs
              + block_b * Sq * E * f32                           # output block
              + block_b * H * Sq * Sk * f32)                     # attn block
    weights = 2 * (E * 3 * E * bf16 + 3 * E * f32 + E * E * bf16 + E * f32)
    interm = (block_b * (Sq + 2 * Sk) * E * (f32 + bf16)         # projections + bf16 head stacks
              + 4 * H * Sq * Sk * f32                            # s / e / p (+ slack)
              + H * Sq * (E // max(H, 1)) * f32)                 # ctx
    return io + weights + interm


def multi_head_attention(query, key, value, params, *, num_heads, block_b=None):
    """query: (B, Sq, E); key/value: (B, Sk, E) float32.
    Returns (output (B, Sq, E), attn (B, H, Sq, Sk))."""
    B, Sq, E = query.shape
    assert key.shape == value.shape, "key and value must have the same shape"
    assert key.shape[0] == B and key.shape[2] == E, "batch / embed dim mismatch"
    Sk = key.shape[1]
    assert E % num_heads == 0
    head_dim = E // num_heads
    scale = head_dim ** (-0.5)

    wq, bq, wk, bk, wv, bv, wo, bo = params

    # Fused QKV weight (E, 3E) and bias (1, 3E); the softmax scale is folded
    # into the Q columns so the kernel never scales the score tensor.
    # Weights are bf16 for the MXU; biases stay f32 (added to the f32 accum).
    w_qkv = jnp.concatenate([wq * scale, wk, wv], axis=1).astype(jnp.bfloat16)
    b_qkv = jnp.concatenate([bq * scale, bk, bv], axis=0).reshape(1, 3 * E).astype(jnp.float32)
    wo_bf = wo.astype(jnp.bfloat16)
    bo_f = bo.reshape(1, E).astype(jnp.float32)

    if block_b is None:
        block_b = _pick_block_b(B, Sq)
    assert B % block_b == 0
    n_blocks = B // block_b

    # True self-attention (the ViT case): one sequence input, one fused matmul.
    self_attn = (query is key) and (key is value)
    n_seq_inputs = 1 if self_attn else 3

    kernel = functools.partial(_mha_kernel,
                               num_heads=num_heads,
                               head_dim=head_dim,
                               self_attn=self_attn)

    if self_attn:
        seq_specs = [pl.BlockSpec((block_b, Sq, E), lambda bidx: (bidx, 0, 0))]
        seq_inputs = (query,)
    else:
        seq_specs = [pl.BlockSpec((block_b, Sq, E), lambda bidx: (bidx, 0, 0)),
                     pl.BlockSpec((block_b, Sk, E), lambda bidx: (bidx, 0, 0)),
                     pl.BlockSpec((block_b, Sk, E), lambda bidx: (bidx, 0, 0))]
        seq_inputs = (query, key, value)

    weight_specs = [
        pl.BlockSpec((E, 3 * E), lambda bidx: (0, 0)),   # fused Wqkv (resident)
        pl.BlockSpec((1, 3 * E), lambda bidx: (0, 0)),   # fused bias
        pl.BlockSpec((E, E), lambda bidx: (0, 0)),       # Wo
        pl.BlockSpec((1, E), lambda bidx: (0, 0)),       # bo
    ]

    # Raise the scoped-VMEM budget only when the conservative 16 MiB default
    # (v5e) would not hold the chosen block; cap below v7x's 64 MiB physical.
    est = _estimate_vmem_bytes(block_b, Sq, Sk, E, num_heads, n_seq_inputs)
    vmem_limit = None
    if est > 16 * 1024 * 1024:
        vmem_limit = min(int(est * 1.25), 64 * 1024 * 1024)

    out, attn = pl.pallas_call(
        kernel,
        out_shape=(
            jax.ShapeDtypeStruct((B, Sq, E), jnp.float32),
            jax.ShapeDtypeStruct((B, num_heads, Sq, Sk), jnp.float32),
        ),
        grid_spec=pltpu.PrefetchScalarGridSpec(
            num_scalar_prefetch=0,
            grid=(n_blocks,),
            in_specs=seq_specs + weight_specs,
            out_specs=[
                pl.BlockSpec((block_b, Sq, E), lambda bidx: (bidx, 0, 0)),
                pl.BlockSpec((block_b, num_heads, Sq, Sk),
                             lambda bidx: (bidx, 0, 0, 0)),
            ],
        ),
        compiler_params=pltpu.CompilerParams(
            dimension_semantics=("parallel",),
            vmem_limit_bytes=vmem_limit),
    )(*seq_inputs, w_qkv, b_qkv, wo_bf, bo_f)
    return out, attn


# ----------------------- Pure-JAX reference (checks) ----------------------- #
def _reference(query, key, value, params, *, num_heads):
    B, Sq, E = query.shape
    Sk = key.shape[1]
    D = E // num_heads
    scale = D ** (-0.5)
    wq, bq, wk, bk, wv, bv, wo, bo = params
    q = (query @ wq + bq).reshape(B, Sq, num_heads, D).transpose(0, 2, 1, 3)
    k = (key @ wk + bk).reshape(B, Sk, num_heads, D).transpose(0, 2, 1, 3)
    v = (value @ wv + bv).reshape(B, Sk, num_heads, D).transpose(0, 2, 1, 3)
    s = jnp.einsum('bhqd,bhkd->bhqk', q, k) * scale
    p = jax.nn.softmax(s, axis=-1)
    ctx = jnp.einsum('bhqk,bhkd->bhqd', p, v)
    ctx = ctx.transpose(0, 2, 1, 3).reshape(B, Sq, E)
    return ctx @ wo + bo, p


# --------------------------------- Main ------------------------------------ #
if __name__ == "__main__":
    B, Sq, Sk, E, H = 2, 8, 16, 32, 4

    key0 = jax.random.PRNGKey(0)
    keys = jax.random.split(key0, 12)

    # Deterministic synthetic parameters (stored as (in, out), i.e. PyTorch W^T).
    def winit(k):
        return jax.random.normal(k, (E, E), dtype=jnp.float32) * (1.0 / jnp.sqrt(E))

    def binit(k):
        return jax.random.normal(k, (E,), dtype=jnp.float32) * 0.01

    params = (
        winit(keys[0]), binit(keys[1]),   # q_proj
        winit(keys[2]), binit(keys[3]),   # k_proj
        winit(keys[4]), binit(keys[5]),   # v_proj
        winit(keys[6]), binit(keys[7]),   # out_proj
    )

    query = jax.random.normal(keys[8], (B, Sq, E), dtype=jnp.float32)
    key_t = jax.random.normal(keys[9], (B, Sk, E), dtype=jnp.float32)
    value = jax.random.normal(keys[10], (B, Sk, E), dtype=jnp.float32)

    # --- Cross-attention path (distinct q/k/v, different source length). ---
    out, attn = multi_head_attention(query, key_t, value, params, num_heads=H)
    out = jax.block_until_ready(out)
    attn = jax.block_until_ready(attn)
    ref_out, ref_attn = _reference(query, key_t, value, params, num_heads=H)
    assert out.shape == (B, Sq, E) and attn.shape == (B, H, Sq, Sk)
    # bf16 MXU operands + approx reciprocal -> loosened tolerances vs f32 ref.
    assert jnp.allclose(attn, ref_attn, atol=2e-2, rtol=2e-2), \
        float(jnp.max(jnp.abs(attn - ref_attn)))
    assert jnp.allclose(out, ref_out, atol=5e-2, rtol=5e-2), \
        float(jnp.max(jnp.abs(out - ref_out)))

    # --- Self-attention path (query is key is value): fused QKV projection. ---
    out_sa, attn_sa = multi_head_attention(query, query, query, params, num_heads=H)
    out_sa = jax.block_until_ready(out_sa)
    attn_sa = jax.block_until_ready(attn_sa)
    ref_out_sa, ref_attn_sa = _reference(query, query, query, params, num_heads=H)
    assert out_sa.shape == (B, Sq, E) and attn_sa.shape == (B, H, Sq, Sq)
    assert jnp.allclose(attn_sa, ref_attn_sa, atol=2e-2, rtol=2e-2), \
        float(jnp.max(jnp.abs(attn_sa - ref_attn_sa)))
    assert jnp.allclose(out_sa, ref_out_sa, atol=5e-2, rtol=5e-2), \
        float(jnp.max(jnp.abs(out_sa - ref_out_sa)))

    print("KERNEL_OK")
</pallas_src>

<mosaic_0001>
module attributes {stable_mosaic.version = 11 : i64} {
  func.func @_mha_kernel(%arg0: i32, %arg1: memref<1x8x32xf32, #tpu.memory_space<vmem>>, %arg2: memref<1x16x32xf32, #tpu.memory_space<vmem>>, %arg3: memref<1x16x32xf32, #tpu.memory_space<vmem>>, %arg4: memref<32x96xbf16, #tpu.memory_space<vmem>>, %arg5: memref<1x96xf32, #tpu.memory_space<vmem>>, %arg6: memref<32x32xbf16, #tpu.memory_space<vmem>>, %arg7: memref<1x32xf32, #tpu.memory_space<vmem>>, %arg8: memref<1x8x32xf32, #tpu.memory_space<vmem>>, %arg9: memref<1x4x8x16xf32, #tpu.memory_space<vmem>>) attributes {dimension_semantics = [#tpu.dimension_semantics<parallel>], iteration_bounds = array<i64: 2>, scalar_prefetch = 0 : i64, scratch_operands = 0 : i64, tpu.core_type = #tpu.core_type<tc>, window_params = [{transform_indices = @transform_0, window_bounds = array<i64: 1, 8, 32>}, {transform_indices = @transform_1, window_bounds = array<i64: 1, 16, 32>}, {transform_indices = @transform_2, window_bounds = array<i64: 1, 16, 32>}, {pipeline_mode = #tpu.pipeline_mode<synchronous>, transform_indices = @transform_3, window_bounds = array<i64: 32, 96>}, {pipeline_mode = #tpu.pipeline_mode<synchronous>, transform_indices = @transform_4, window_bounds = array<i64: 1, 96>}, {pipeline_mode = #tpu.pipeline_mode<synchronous>, transform_indices = @transform_5, window_bounds = array<i64: 32, 32>}, {pipeline_mode = #tpu.pipeline_mode<synchronous>, transform_indices = @transform_6, window_bounds = array<i64: 1, 32>}, {transform_indices = @transform_7, window_bounds = array<i64: 1, 8, 32>}, {transform_indices = @transform_8, window_bounds = array<i64: 1, 4, 8, 16>}]} {
    %c0 = arith.constant 0 : index
    %c0_0 = arith.constant 0 : index
    %0 = vector.load %arg4[%c0, %c0_0] : memref<32x96xbf16, #tpu.memory_space<vmem>>, vector<32x96xbf16>
    %c0_1 = arith.constant 0 : index
    %c0_2 = arith.constant 0 : index
    %1 = vector.load %arg5[%c0_1, %c0_2] : memref<1x96xf32, #tpu.memory_space<vmem>>, vector<1x96xf32>
    %c0_3 = arith.constant 0 : index
    %c0_4 = arith.constant 0 : index
    %c0_5 = arith.constant 0 : index
    %2 = vector.load %arg1[%c0_3, %c0_4, %c0_5] : memref<1x8x32xf32, #tpu.memory_space<vmem>>, vector<1x8x32xf32>
    %3 = vector.shape_cast %2 : vector<1x8x32xf32> to vector<8x32xf32>
    %4 = arith.truncf %3 : vector<8x32xf32> to vector<8x32xbf16>
    %c0_6 = arith.constant 0 : index
    %c0_7 = arith.constant 0 : index
    %c0_8 = arith.constant 0 : index
    %5 = vector.load %arg2[%c0_6, %c0_7, %c0_8] : memref<1x16x32xf32, #tpu.memory_space<vmem>>, vector<1x16x32xf32>
    %6 = vector.shape_cast %5 : vector<1x16x32xf32> to vector<16x32xf32>
    %7 = arith.truncf %6 : vector<16x32xf32> to vector<16x32xbf16>
    %c0_9 = arith.constant 0 : index
    %c0_10 = arith.constant 0 : index
    %c0_11 = arith.constant 0 : index
    %8 = vector.load %arg3[%c0_9, %c0_10, %c0_11] : memref<1x16x32xf32, #tpu.memory_space<vmem>>, vector<1x16x32xf32>
    %9 = vector.shape_cast %8 : vector<1x16x32xf32> to vector<16x32xf32>
    %10 = arith.truncf %9 : vector<16x32xf32> to vector<16x32xbf16>
    %11 = vector.extract_strided_slice %0 {offsets = [0, 0], sizes = [32, 32], strides = [1, 1]} : vector<32x96xbf16> to vector<32x32xbf16>
    %cst = arith.constant dense<0.000000e+00> : vector<8x32xf32>
    %12 = tpu.matmul %4, %11, %cst {dimension_numbers = #tpu.dot_dimension_numbers<[1], [0], [0], [1], [0, 0, 1, 1], [], []>} : vector<8x32xbf16>, vector<32x32xbf16>, vector<8x32xf32> -> vector<8x32xf32>
    %13 = vector.extract_strided_slice %1 {offsets = [0, 0], sizes = [1, 32], strides = [1, 1]} : vector<1x96xf32> to vector<1x32xf32>
    %14 = vector.broadcast %13 : vector<1x32xf32> to vector<8x32xf32>
    %15 = arith.addf %12, %14 : vector<8x32xf32>
    %16 = vector.extract_strided_slice %0 {offsets = [0, 32], sizes = [32, 32], strides = [1, 1]} : vector<32x96xbf16> to vector<32x32xbf16>
    %cst_12 = arith.constant dense<0.000000e+00> : vector<16x32xf32>
    %17 = tpu.matmul %7, %16, %cst_12 {dimension_numbers = #tpu.dot_dimension_numbers<[1], [0], [0], [1], [0, 0, 1, 1], [], []>} : vector<16x32xbf16>, vector<32x32xbf16>, vector<16x32xf32> -> vector<16x32xf32>
    %18 = vector.extract_strided_slice %1 {offsets = [0, 32], sizes = [1, 32], strides = [1, 1]} : vector<1x96xf32> to vector<1x32xf32>
    %19 = vector.broadcast %18 : vector<1x32xf32> to vector<16x32xf32>
    %20 = arith.addf %17, %19 : vector<16x32xf32>
    %21 = vector.extract_strided_slice %0 {offsets = [0, 64], sizes = [32, 32], strides = [1, 1]} : vector<32x96xbf16> to vector<32x32xbf16>
    %cst_13 = arith.constant dense<0.000000e+00> : vector<16x32xf32>
    %22 = tpu.matmul %10, %21, %cst_13 {dimension_numbers = #tpu.dot_dimension_numbers<[1], [0], [0], [1], [0, 0, 1, 1], [], []>} : vector<16x32xbf16>, vector<32x32xbf16>, vector<16x32xf32> -> vector<16x32xf32>
    %23 = vector.extract_strided_slice %1 {offsets = [0, 64], sizes = [1, 32], strides = [1, 1]} : vector<1x96xf32> to vector<1x32xf32>
    %24 = vector.broadcast %23 : vector<1x32xf32> to vector<16x32xf32>
    %25 = arith.addf %22, %24 : vector<16x32xf32>
    %c0_14 = arith.constant 0 : index
    %c0_15 = arith.constant 0 : index
    %26 = vector.load %arg6[%c0_14, %c0_15] : memref<32x32xbf16, #tpu.memory_space<vmem>>, vector<32x32xbf16>
    %c0_16 = arith.constant 0 : index
    %c0_17 = arith.constant 0 : index
    %27 = vector.load %arg7[%c0_16, %c0_17] : memref<1x32xf32, #tpu.memory_space<vmem>>, vector<1x32xf32>
    %28 = vector.extract_strided_slice %15 {offsets = [0, 0], sizes = [8, 8], strides = [1, 1]} : vector<8x32xf32> to vector<8x8xf32>
    %29 = vector.extract_strided_slice %15 {offsets = [0, 8], sizes = [8, 8], strides = [1, 1]} : vector<8x32xf32> to vector<8x8xf32>
    %30 = vector.extract_strided_slice %15 {offsets = [0, 16], sizes = [8, 8], strides = [1, 1]} : vector<8x32xf32> to vector<8x8xf32>
    %31 = vector.extract_strided_slice %15 {offsets = [0, 24], sizes = [8, 8], strides = [1, 1]} : vector<8x32xf32> to vector<8x8xf32>
    %32 = vector.shape_cast %28 : vector<8x8xf32> to vector<1x8x8xf32>
    %33 = vector.shape_cast %29 : vector<8x8xf32> to vector<1x8x8xf32>
    %34 = vector.shape_cast %30 : vector<8x8xf32> to vector<1x8x8xf32>
    %35 = vector.shape_cast %31 : vector<8x8xf32> to vector<1x8x8xf32>
    %36 = tpu.concatenate %32, %33, %34, %35 in 0 : vector<1x8x8xf32>, vector<1x8x8xf32>, vector<1x8x8xf32>, vector<1x8x8xf32> -> vector<4x8x8xf32>
    %37 = arith.truncf %36 : vector<4x8x8xf32> to vector<4x8x8xbf16>
    %38 = vector.extract_strided_slice %20 {offsets = [0, 0], sizes = [16, 8], strides = [1, 1]} : vector<16x32xf32> to vector<16x8xf32>
    %39 = vector.extract_strided_slice %20 {offsets = [0, 8], sizes = [16, 8], strides = [1, 1]} : vector<16x32xf32> to vector<16x8xf32>
    %40 = vector.extract_strided_slice %20 {offsets = [0, 16], sizes = [16, 8], strides = [1, 1]} : vector<16x32xf32> to vector<16x8xf32>
    %41 = vector.extract_strided_slice %20 {offsets = [0, 24], sizes = [16, 8], strides = [1, 1]} : vector<16x32xf32> to vector<16x8xf32>
    %42 = vector.shape_cast %38 : vector<16x8xf32> to vector<1x16x8xf32>
    %43 = vector.shape_cast %39 : vector<16x8xf32> to vector<1x16x8xf32>
    %44 = vector.shape_cast %40 : vector<16x8xf32> to vector<1x16x8xf32>
    %45 = vector.shape_cast %41 : vector<16x8xf32> to vector<1x16x8xf32>
    %46 = tpu.concatenate %42, %43, %44, %45 in 0 : vector<1x16x8xf32>, vector<1x16x8xf32>, vector<1x16x8xf32>, vector<1x16x8xf32> -> vector<4x16x8xf32>
    %47 = arith.truncf %46 : vector<4x16x8xf32> to vector<4x16x8xbf16>
    %48 = vector.extract_strided_slice %25 {offsets = [0, 0], sizes = [16, 8], strides = [1, 1]} : vector<16x32xf32> to vector<16x8xf32>
    %49 = vector.extract_strided_slice %25 {offsets = [0, 8], sizes = [16, 8], strides = [1, 1]} : vector<16x32xf32> to vector<16x8xf32>
    %50 = vector.extract_strided_slice %25 {offsets = [0, 16], sizes = [16, 8], strides = [1, 1]} : vector<16x32xf32> to vector<16x8xf32>
    %51 = vector.extract_strided_slice %25 {offsets = [0, 24], sizes = [16, 8], strides = [1, 1]} : vector<16x32xf32> to vector<16x8xf32>
    %52 = vector.shape_cast %48 : vector<16x8xf32> to vector<1x16x8xf32>
    %53 = vector.shape_cast %49 : vector<16x8xf32> to vector<1x16x8xf32>
    %54 = vector.shape_cast %50 : vector<16x8xf32> to vector<1x16x8xf32>
    %55 = vector.shape_cast %51 : vector<16x8xf32> to vector<1x16x8xf32>
    %56 = tpu.concatenate %52, %53, %54, %55 in 0 : vector<1x16x8xf32>, vector<1x16x8xf32>, vector<1x16x8xf32>, vector<1x16x8xf32> -> vector<4x16x8xf32>
    %57 = arith.truncf %56 : vector<4x16x8xf32> to vector<4x16x8xbf16>
    "tpu.trace_start"() <{level = 10 : i32, message = "hqd,hkd->hqk"}> : () -> ()
    %cst_18 = arith.constant dense<0.000000e+00> : vector<4x8x16xf32>
    %58 = tpu.matmul %37, %47, %cst_18 {dimension_numbers = #tpu.dot_dimension_numbers<[2], [2], [1], [1], [0, 0, 0, 1, 1, 1], [0], [0]>} : vector<4x8x8xbf16>, vector<4x16x8xbf16>, vector<4x8x16xf32> -> vector<4x8x16xf32>
    "tpu.trace_stop"() : () -> ()
    %cst_19 = arith.constant dense<0xFF800000> : vector<4x8xf32>
    %59 = vector.multi_reduction <maximumf>, %58, %cst_19 [2] : vector<4x8x16xf32> to vector<4x8xf32>
    %60 = vector.shape_cast %59 : vector<4x8xf32> to vector<4x8x1xf32>
    %61 = vector.broadcast %60 : vector<4x8x1xf32> to vector<4x8x16xf32>
    %62 = arith.subf %58, %61 : vector<4x8x16xf32>
    %63 = math.exp %62 : vector<4x8x16xf32>
    %cst_20 = arith.constant dense<0.000000e+00> : vector<4x8xf32>
    %64 = vector.multi_reduction <add>, %63, %cst_20 [2] : vector<4x8x16xf32> to vector<4x8xf32>
    %65 = vector.shape_cast %64 : vector<4x8xf32> to vector<4x8x1xf32>
    %66 = tpu.reciprocal %65 {approx = true} : vector<4x8x1xf32> -> vector<4x8x1xf32>
    %67 = vector.broadcast %66 : vector<4x8x1xf32> to vector<4x8x16xf32>
    %68 = arith.mulf %63, %67 : vector<4x8x16xf32>
    %c0_21 = arith.constant 0 : index
    %c0_22 = arith.constant 0 : index
    %c0_23 = arith.constant 0 : index
    %c0_24 = arith.constant 0 : index
    %69 = vector.load %arg9[%c0_21, %c0_22, %c0_23, %c0_24] : memref<1x4x8x16xf32, #tpu.memory_space<vmem>>, vector<1x4x8x16xf32>
    %70 = vector.shape_cast %69 : vector<1x4x8x16xf32> to vector<4x8x16xf32>
    %71 = vector.shape_cast %68 : vector<4x8x16xf32> to vector<1x4x8x16xf32>
    tpu.vector_store %arg9[%c0_21, %c0_22, %c0_23, %c0_24], %71 {strides = array<i32>} : memref<1x4x8x16xf32, #tpu.memory_space<vmem>>, vector<1x4x8x16xf32>,
    %72 = arith.truncf %68 : vector<4x8x16xf32> to vector<4x8x16xbf16>
    "tpu.trace_start"() <{level = 10 : i32, message = "hqk,hkd->hqd"}> : () -> ()
    %cst_25 = arith.constant dense<0.000000e+00> : vector<4x8x8xf32>
    %73 = tpu.matmul %72, %57, %cst_25 {dimension_numbers = #tpu.dot_dimension_numbers<[2], [1], [1], [2], [0, 0, 0, 1, 1, 2], [0], [0]>} : vector<4x8x16xbf16>, vector<4x16x8xbf16>, vector<4x8x8xf32> -> vector<4x8x8xf32>
    "tpu.trace_stop"() : () -> ()
    %74 = vector.extract_strided_slice %73 {offsets = [0, 0, 0], sizes = [1, 8, 8], strides = [1, 1, 1]} : vector<4x8x8xf32> to vector<1x8x8xf32>
    %75 = vector.shape_cast %74 : vector<1x8x8xf32> to vector<8x8xf32>
    %76 = arith.truncf %75 : vector<8x8xf32> to vector<8x8xbf16>
    %77 = vector.extract_strided_slice %26 {offsets = [0, 0], sizes = [8, 32], strides = [1, 1]} : vector<32x32xbf16> to vector<8x32xbf16>
    %cst_26 = arith.constant dense<0.000000e+00> : vector<8x32xf32>
    %78 = tpu.matmul %76, %77, %cst_26 {dimension_numbers = #tpu.dot_dimension_numbers<[1], [0], [0], [1], [0, 0, 1, 1], [], []>} : vector<8x8xbf16>, vector<8x32xbf16>, vector<8x32xf32> -> vector<8x32xf32>
    %79 = vector.extract_strided_slice %73 {offsets = [1, 0, 0], sizes = [1, 8, 8], strides = [1, 1, 1]} : vector<4x8x8xf32> to vector<1x8x8xf32>
    %80 = vector.shape_cast %79 : vector<1x8x8xf32> to vector<8x8xf32>
    %81 = arith.truncf %80 : vector<8x8xf32> to vector<8x8xbf16>
    %82 = vector.extract_strided_slice %26 {offsets = [8, 0], sizes = [8, 32], strides = [1, 1]} : vector<32x32xbf16> to vector<8x32xbf16>
    %cst_27 = arith.constant dense<0.000000e+00> : vector<8x32xf32>
    %83 = tpu.matmul %81, %82, %cst_27 {dimension_numbers = #tpu.dot_dimension_numbers<[1], [0], [0], [1], [0, 0, 1, 1], [], []>} : vector<8x8xbf16>, vector<8x32xbf16>, vector<8x32xf32> -> vector<8x32xf32>
    %84 = arith.addf %78, %83 : vector<8x32xf32>
    %85 = vector.extract_strided_slice %73 {offsets = [2, 0, 0], sizes = [1, 8, 8], strides = [1, 1, 1]} : vector<4x8x8xf32> to vector<1x8x8xf32>
    %86 = vector.shape_cast %85 : vector<1x8x8xf32> to vector<8x8xf32>
    %87 = arith.truncf %86 : vector<8x8xf32> to vector<8x8xbf16>
    %88 = vector.extract_strided_slice %26 {offsets = [16, 0], sizes = [8, 32], strides = [1, 1]} : vector<32x32xbf16> to vector<8x32xbf16>
    %cst_28 = arith.constant dense<0.000000e+00> : vector<8x32xf32>
    %89 = tpu.matmul %87, %88, %cst_28 {dimension_numbers = #tpu.dot_dimension_numbers<[1], [0], [0], [1], [0, 0, 1, 1], [], []>} : vector<8x8xbf16>, vector<8x32xbf16>, vector<8x32xf32> -> vector<8x32xf32>
    %90 = arith.addf %84, %89 : vector<8x32xf32>
    %91 = vector.extract_strided_slice %73 {offsets = [3, 0, 0], sizes = [1, 8, 8], strides = [1, 1, 1]} : vector<4x8x8xf32> to vector<1x8x8xf32>
    %92 = vector.shape_cast %91 : vector<1x8x8xf32> to vector<8x8xf32>
    %93 = arith.truncf %92 : vector<8x8xf32> to vector<8x8xbf16>
    %94 = vector.extract_strided_slice %26 {offsets = [24, 0], sizes = [8, 32], strides = [1, 1]} : vector<32x32xbf16> to vector<8x32xbf16>
    %cst_29 = arith.constant dense<0.000000e+00> : vector<8x32xf32>
    %95 = tpu.matmul %93, %94, %cst_29 {dimension_numbers = #tpu.dot_dimension_numbers<[1], [0], [0], [1], [0, 0, 1, 1], [], []>} : vector<8x8xbf16>, vector<8x32xbf16>, vector<8x32xf32> -> vector<8x32xf32>
    %96 = arith.addf %90, %95 : vector<8x32xf32>
    %97 = vector.broadcast %27 : vector<1x32xf32> to vector<8x32xf32>
    %98 = arith.addf %96, %97 : vector<8x32xf32>
    %c0_30 = arith.constant 0 : index
    %c0_31 = arith.constant 0 : index
    %c0_32 = arith.constant 0 : index
    %99 = vector.load %arg8[%c0_30, %c0_31, %c0_32] : memref<1x8x32xf32, #tpu.memory_space<vmem>>, vector<1x8x32xf32>
    %100 = vector.shape_cast %99 : vector<1x8x32xf32> to vector<8x32xf32>
    %101 = vector.shape_cast %98 : vector<8x32xf32> to vector<1x8x32xf32>
    tpu.vector_store %arg8[%c0_30, %c0_31, %c0_32], %101 {strides = array<i32>} : memref<1x8x32xf32, #tpu.memory_space<vmem>>, vector<1x8x32xf32>,
    return
  }
  func.func @transform_0(%arg0: i32) -> (i32, i32, i32) {
    %c0_i32 = arith.constant 0 : i32
    %c0_i32_0 = arith.constant 0 : i32
    %c0_i32_1 = arith.constant 0 : i32
    return %arg0, %c0_i32, %c0_i32_0 : i32, i32, i32
  }
  func.func @transform_1(%arg0: i32) -> (i32, i32, i32) {
    %c0_i32 = arith.constant 0 : i32
    %c0_i32_0 = arith.constant 0 : i32
    %c0_i32_1 = arith.constant 0 : i32
    return %arg0, %c0_i32, %c0_i32_0 : i32, i32, i32
  }
  func.func @transform_2(%arg0: i32) -> (i32, i32, i32) {
    %c0_i32 = arith.constant 0 : i32
    %c0_i32_0 = arith.constant 0 : i32
    %c0_i32_1 = arith.constant 0 : i32
    return %arg0, %c0_i32, %c0_i32_0 : i32, i32, i32
  }
  func.func @transform_3(%arg0: i32) -> (i32, i32) {
    %c0_i32 = arith.constant 0 : i32
    %c0_i32_0 = arith.constant 0 : i32
    %c0_i32_1 = arith.constant 0 : i32
    return %c0_i32, %c0_i32_0 : i32, i32
  }
  func.func @transform_4(%arg0: i32) -> (i32, i32) {
    %c0_i32 = arith.constant 0 : i32
    %c0_i32_0 = arith.constant 0 : i32
    %c0_i32_1 = arith.constant 0 : i32
    return %c0_i32, %c0_i32_0 : i32, i32
  }
  func.func @transform_5(%arg0: i32) -> (i32, i32) {
    %c0_i32 = arith.constant 0 : i32
    %c0_i32_0 = arith.constant 0 : i32
    %c0_i32_1 = arith.constant 0 : i32
    return %c0_i32, %c0_i32_0 : i32, i32
  }
  func.func @transform_6(%arg0: i32) -> (i32, i32) {
    %c0_i32 = arith.constant 0 : i32
    %c0_i32_0 = arith.constant 0 : i32
    %c0_i32_1 = arith.constant 0 : i32
    return %c0_i32, %c0_i32_0 : i32, i32
  }
  func.func @transform_7(%arg0: i32) -> (i32, i32, i32) {
    %c0_i32 = arith.constant 0 : i32
    %c0_i32_0 = arith.constant 0 : i32
    %c0_i32_1 = arith.constant 0 : i32
    return %arg0, %c0_i32, %c0_i32_0 : i32, i32, i32
  }
  func.func @transform_8(%arg0: i32) -> (i32, i32, i32, i32) {
    %c0_i32 = arith.constant 0 : i32
    %c0_i32_0 = arith.constant 0 : i32
    %c0_i32_1 = arith.constant 0 : i32
    %c0_i32_2 = arith.constant 0 : i32
    return %arg0, %c0_i32, %c0_i32_0, %c0_i32_1 : i32, i32, i32, i32
  }
}

</mosaic_0001>

<llo_original>
// kernel: tpu_custom_call.1
$region0: #{tpu_custom_call.1}
  #allocation0 [shape = 'u32[]', space=smem, size = 0x4, offset = 0x4, fixed_abs, tag = 'smem constant byte address 0x4 - core index']
  #allocation1 [shape = 'u32[144,128]{1,0:T(1,128)}', space=vmem, size = 0x12000, scoped, tag = 'internal scratch']
  %s0 = inlined_call_operand.hbm [shape: f32[2,8,32], index: 0, kind: input, shape index: {}]
  %s1 = inlined_call_operand.hbm [shape: f32[2,16,32], index: 1, kind: input, shape index: {}]
  %s2 = inlined_call_operand.hbm [shape: f32[2,16,32], index: 2, kind: input, shape index: {}]
  %s3 = inlined_call_operand.hbm [shape: bf16[32,96], index: 3, kind: input, shape index: {}]
  %s4 = inlined_call_operand.vmem [shape: f32[1,96], index: 4, kind: input, shape index: {}]
  %s5 = inlined_call_operand.hbm [shape: bf16[32,32], index: 5, kind: input, shape index: {}]
  %s6 = inlined_call_operand.vmem [shape: f32[1,32], index: 6, kind: input, shape index: {}]
  %s7 = inlined_call_operand.hbm [shape: f32[2,8,32], index: 7, kind: output, shape index: {0}]
  %s8 = inlined_call_operand.hbm [shape: f32[2,4,8,16], index: 8, kind: output, shape index: {1}]
  %9 = xla_tuple %s7, %s8
  %s10 = sld [smem:[#allocation0]]
  $region89: #{tpu_custom_call.1} parent=0
    _
  %s12 = ssub.s32 1, %s10
  %s13 = scalar_select 0, %s12, %s10
  $region1: #{tpu_custom_call.1} parent=0
    #allocation2 [shape = 'u8[8192]{0}', space=vmem, size = 0x2000, scoped, tag = 'input window, operand 0']
    #allocation3 [shape = 's32[2]{0}', space=sflag, size = 0x8, scoped, tag = 'scoped memory for tpu_custom_call.1']
    #allocation4 [shape = 's32[2]{0}', space=sflag, size = 0x8, scoped, tag = 'scoped memory for tpu_custom_call.1']
    #allocation5 [shape = 'u8[16384]{0}', space=vmem, size = 0x4000, scoped, tag = 'input window, operand 1']
    #allocation6 [shape = 's32[2]{0}', space=sflag, size = 0x8, scoped, tag = 'scoped memory for tpu_custom_call.1']
    #allocation7 [shape = 'u8[16384]{0}', space=vmem, size = 0x4000, scoped, tag = 'input window, operand 2']
    #allocation8 [shape = 'u8[8192]{0}', space=vmem, size = 0x2000, scoped, tag = 'input window, operand 3, single buffered']
    #allocation9 [shape = 's32[1]{0}', space=sflag, size = 0x4, scoped, tag = 'scoped memory for tpu_custom_call.1']
    #allocation10 [shape = 'u8[8192]{0}', space=vmem, size = 0x2000, scoped, tag = 'input window, operand 5, single buffered']
    #allocation11 [shape = 'u8[8192]{0}', space=vmem, size = 0x2000, scoped, tag = 'output window, operand 0']
    #allocation12 [shape = 'u8[32768]{0}', space=vmem, size = 0x8000, scoped, tag = 'output window, operand 1']
    #allocation13 [shape = 's32[2]{0}', space=sflag, size = 0x8, scoped, tag = 'scoped memory for tpu_custom_call.1']
    %14 = vsyncpa [#allocation3], 0
    %s15 = scalar_lea.sflag [#allocation3], 1
    %16 = vsyncpa %s15, 0
    %17 = vsyncpa [#allocation6], 0
    %s18 = scalar_lea.sflag [#allocation6], 1
    %19 = vsyncpa %s18, 0
    %20 = vsyncpa [#allocation9], 0
    %21 = vsyncpa [#allocation4], 0
    %s22 = scalar_lea.sflag [#allocation4], 1
    %23 = vsyncpa %s22, 0
    %24 = vsyncpa [#allocation13], 0
    %s25 = scalar_lea.sflag [#allocation13], 1
    %26 = vsyncpa %s25, 0
    loop: start=0, step=1, limit=4
    $region2: #{tpu_custom_call.1} parent=1 // loop_pre_header
      _
    $region3: #{tpu_custom_call.1} parent=1 // loop_header
      %s28 = sphi 0, %s32
      %p29 = scmp.ge.s32.totalorder %s28, 4
      %s38 = sphi 0, %s40
      %s41 = sphi 0, %s38
      %s42 = sphi 0, %s41
      %s58 = sphi 0, %s42
      %s64 = sphi 0, %s66
      %s67 = sphi 0, %s64
      %s68 = sphi 0, %s67
      %s84 = sphi 0, %s68
      %s90 = sphi 0, %s92
      %s93 = sphi 0, %s90
      %s94 = sphi 0, %s93
      %s110 = sphi 0, %s94
      %s114 = sphi 0, %s114
      %s116 = sphi 0, %s114
      %s117 = sphi 0, %s116
      %s131 = sphi 0, %s117
      %s135 = sphi 0, %s135
      %s137 = sphi 0, %s135
      %s138 = sphi 0, %s137
      %s152 = sphi 0, %s138
      %s156 = sphi 0, %s156
      %s158 = sphi 0, %s156
      %s159 = sphi 0, %s158
      %s173 = sphi 0, %s159
      %s177 = sphi 0, %s177
      %s179 = sphi 0, %s177
      %s180 = sphi 0, %s179
      %s194 = sphi 0, %s180
      %s200 = sphi 0, %s202
      %s203 = sphi 0, %s200
      %s204 = sphi 0, %s203
      %s220 = sphi 0, %s204
      %s226 = sphi 0, %s228
      %s229 = sphi 0, %s226
      %s230 = sphi 0, %s229
      %s246 = sphi 0, %s230
    $region4: #{tpu_custom_call.1} parent=1 // loop_header_branch
      %31 = sbr.rel (%p29) target = $region8
    $region5: #{tpu_custom_call.1} parent=1 // loop_body
      %s33 = ssub.s32 %s28, 1
      %s34 = ssub.s32 %s28, 2
      %s35 = sadd.s32 %s28, 1
      %s36 = ssub.s32 %s28, %s35
      %p37 = scmp.eq.s32.totalorder %s36, 0
      %s39 = sadd.s32 %s38, 1
      %s40 = scalar_select %p37, %s38, %s39
      %p43 = pneg %p37
      %p44 = scmp.eq.s32.totalorder %s28, 1
      %p45 = por %p43, %p44
      %p46 = scmp.ne.s32.totalorder %s38, %s41
      %p47 = scmp.eq.s32.totalorder %s28, 0
      %p48 = por %p46, %p47
      %p49 = scmp.ne.s32.totalorder %s38, %s41
      %p50 = scmp.eq.s32.totalorder %s33, 1
      %p51 = por %p49, %p50
      %p52 = scmp.ne.s32.totalorder %s41, %s42
      %p53 = scmp.eq.s32.totalorder %s33, 0
      %p54 = por %p52, %p53
      %p55 = scmp.ne.s32.totalorder %s41, %s42
      %p56 = scmp.eq.s32.totalorder %s34, 1
      %p57 = por %p55, %p56
      %p59 = scmp.ne.s32.totalorder %s42, %s58
      %p60 = scmp.eq.s32.totalorder %s34, 0
      %p61 = por %p59, %p60
      %s62 = ssub.s32 %s28, %s35
      %p63 = scmp.eq.s32.totalorder %s62, 0
      %s65 = sadd.s32 %s64, 1
      %s66 = scalar_select %p63, %s64, %s65
      %p69 = pneg %p63
      %p70 = scmp.eq.s32.totalorder %s28, 1
      %p71 = por %p69, %p70
      %p72 = scmp.ne.s32.totalorder %s64, %s67
      %p73 = scmp.eq.s32.totalorder %s28, 0
      %p74 = por %p72, %p73
      %p75 = scmp.ne.s32.totalorder %s64, %s67
      %p76 = scmp.eq.s32.totalorder %s33, 1
      %p77 = por %p75, %p76
      %p78 = scmp.ne.s32.totalorder %s67, %s68
      %p79 = scmp.eq.s32.totalorder %s33, 0
      %p80 = por %p78, %p79
      %p81 = scmp.ne.s32.totalorder %s67, %s68
      %p82 = scmp.eq.s32.totalorder %s34, 1
      %p83 = por %p81, %p82
      %p85 = scmp.ne.s32.totalorder %s68, %s84
      %p86 = scmp.eq.s32.totalorder %s34, 0
      %p87 = por %p85, %p86
      %s88 = ssub.s32 %s28, %s35
      %p89 = scmp.eq.s32.totalorder %s88, 0
      %s91 = sadd.s32 %s90, 1
      %s92 = scalar_select %p89, %s90, %s91
      %p95 = pneg %p89
      %p96 = scmp.eq.s32.totalorder %s28, 1
      %p97 = por %p95, %p96
      %p98 = scmp.ne.s32.totalorder %s90, %s93
      %p99 = scmp.eq.s32.totalorder %s28, 0
      %p100 = por %p98, %p99
      %p101 = scmp.ne.s32.totalorder %s90, %s93
      %p102 = scmp.eq.s32.totalorder %s33, 1
      %p103 = por %p101, %p102
      %p104 = scmp.ne.s32.totalorder %s93, %s94
      %p105 = scmp.eq.s32.totalorder %s33, 0
      %p106 = por %p104, %p105
      %p107 = scmp.ne.s32.totalorder %s93, %s94
      %p108 = scmp.eq.s32.totalorder %s34, 1
      %p109 = por %p107, %p108
      %p111 = scmp.ne.s32.totalorder %s94, %s110
      %p112 = scmp.eq.s32.totalorder %s34, 0
      %p113 = por %p111, %p112
      %s115 = sadd.s32 %s114, 1
      %p118 = scmp.eq.s32.totalorder %s28, 1
      %p119 = scmp.ne.s32.totalorder %s114, %s116
      %p120 = scmp.eq.s32.totalorder %s28, 0
      %p121 = por %p119, %p120
      %p122 = scmp.ne.s32.totalorder %s114, %s116
      %p123 = scmp.eq.s32.totalorder %s33, 1
      %p124 = por %p122, %p123
      %p125 = scmp.ne.s32.totalorder %s116, %s117
      %p126 = scmp.eq.s32.totalorder %s33, 0
      %p127 = por %p125, %p126
      %p128 = scmp.ne.s32.totalorder %s116, %s117
      %p129 = scmp.eq.s32.totalorder %s34, 1
      %p130 = por %p128, %p129
      %p132 = scmp.ne.s32.totalorder %s117, %s131
      %p133 = scmp.eq.s32.totalorder %s34, 0
      %p134 = por %p132, %p133
      %s136 = sadd.s32 %s135, 1
      %p139 = scmp.eq.s32.totalorder %s28, 1
      %p140 = scmp.ne.s32.totalorder %s135, %s137
      %p141 = scmp.eq.s32.totalorder %s28, 0
      %p142 = por %p140, %p141
      %p143 = scmp.ne.s32.totalorder %s135, %s137
      %p144 = scmp.eq.s32.totalorder %s33, 1
      %p145 = por %p143, %p144
      %p146 = scmp.ne.s32.totalorder %s137, %s138
      %p147 = scmp.eq.s32.totalorder %s33, 0
      %p148 = por %p146, %p147
      %p149 = scmp.ne.s32.totalorder %s137, %s138
      %p150 = scmp.eq.s32.totalorder %s34, 1
      %p151 = por %p149, %p150
      %p153 = scmp.ne.s32.totalorder %s138, %s152
      %p154 = scmp.eq.s32.totalorder %s34, 0
      %p155 = por %p153, %p154
      %s157 = sadd.s32 %s156, 1
      %p160 = scmp.eq.s32.totalorder %s28, 1
      %p161 = scmp.ne.s32.totalorder %s156, %s158
      %p162 = scmp.eq.s32.totalorder %s28, 0
      %p163 = por %p161, %p162
      %p164 = scmp.ne.s32.totalorder %s156, %s158
      %p165 = scmp.eq.s32.totalorder %s33, 1
      %p166 = por %p164, %p165
      %p167 = scmp.ne.s32.totalorder %s158, %s159
      %p168 = scmp.eq.s32.totalorder %s33, 0
      %p169 = por %p167, %p168
      %p170 = scmp.ne.s32.totalorder %s158, %s159
      %p171 = scmp.eq.s32.totalorder %s34, 1
      %p172 = por %p170, %p171
      %p174 = scmp.ne.s32.totalorder %s159, %s173
      %p175 = scmp.eq.s32.totalorder %s34, 0
      %p176 = por %p174, %p175
      %s178 = sadd.s32 %s177, 1
      %p181 = scmp.eq.s32.totalorder %s28, 1
      %p182 = scmp.ne.s32.totalorder %s177, %s179
      %p183 = scmp.eq.s32.totalorder %s28, 0
      %p184 = por %p182, %p183
      %p185 = scmp.ne.s32.totalorder %s177, %s179
      %p186 = scmp.eq.s32.totalorder %s33, 1
      %p187 = por %p185, %p186
      %p188 = scmp.ne.s32.totalorder %s179, %s180
      %p189 = scmp.eq.s32.totalorder %s33, 0
      %p190 = por %p188, %p189
      %p191 = scmp.ne.s32.totalorder %s179, %s180
      %p192 = scmp.eq.s32.totalorder %s34, 1
      %p193 = por %p191, %p192
      %p195 = scmp.ne.s32.totalorder %s180, %s194
      %p196 = scmp.eq.s32.totalorder %s34, 0
      %p197 = por %p195, %p196
      %s198 = ssub.s32 %s28, %s35
      %p199 = scmp.eq.s32.totalorder %s198, 0
      %s201 = sadd.s32 %s200, 1
      %s202 = scalar_select %p199, %s200, %s201
      %p205 = pneg %p199
      %p206 = scmp.eq.s32.totalorder %s28, 1
      %p207 = por %p205, %p206
      %p208 = scmp.ne.s32.totalorder %s200, %s203
      %p209 = scmp.eq.s32.totalorder %s28, 0
      %p210 = por %p208, %p209
      %p211 = scmp.ne.s32.totalorder %s200, %s203
      %p212 = scmp.eq.s32.totalorder %s33, 1
      %p213 = por %p211, %p212
      %p214 = scmp.ne.s32.totalorder %s203, %s204
      %p215 = scmp.eq.s32.totalorder %s33, 0
      %p216 = por %p214, %p215
      %p217 = scmp.ne.s32.totalorder %s203, %s204
      %p218 = scmp.eq.s32.totalorder %s34, 1
      %p219 = por %p217, %p218
      %p221 = scmp.ne.s32.totalorder %s204, %s220
      %p222 = scmp.eq.s32.totalorder %s34, 0
      %p223 = por %p221, %p222
      %s224 = ssub.s32 %s28, %s35
      %p225 = scmp.eq.s32.totalorder %s224, 0
      %s227 = sadd.s32 %s226, 1
      %s228 = scalar_select %p225, %s226, %s227
      %p231 = pneg %p225
      %p232 = scmp.eq.s32.totalorder %s28, 1
      %p233 = por %p231, %p232
      %p234 = scmp.ne.s32.totalorder %s226, %s229
      %p235 = scmp.eq.s32.totalorder %s28, 0
      %p236 = por %p234, %p235
      %p237 = scmp.ne.s32.totalorder %s226, %s229
      %p238 = scmp.eq.s32.totalorder %s33, 1
      %p239 = por %p237, %p238
      %p240 = scmp.ne.s32.totalorder %s229, %s230
      %p241 = scmp.eq.s32.totalorder %s33, 0
      %p242 = por %p240, %p241
      %p243 = scmp.ne.s32.totalorder %s229, %s230
      %p244 = scmp.eq.s32.totalorder %s34, 1
      %p245 = por %p243, %p244
      %p247 = scmp.ne.s32.totalorder %s230, %s246
      %p248 = scmp.eq.s32.totalorder %s34, 0
      %p249 = por %p247, %p248
      %p250 = scmp.le.s32.totalorder 1, %s28
      %p251 = scmp.lt.s32.totalorder %s28, 3
      %p252 = pnand %p250, %p251
      %p253 = pneg %p252
      // Predicated region
      $region9: #{tpu_custom_call.1} parent=5 // pred_check
        _
      $region10: #{tpu_custom_call.1} parent=5 // pred_check_branch
        %255 = sbr.rel (%p252) target = $region12
      $region11: #{tpu_custom_call.1} parent=5 // pred_region
        %s256 = ssub.s32 %s28, 1
        // Predicated region
        $region13: #{tpu_custom_call.1} parent=11 // pred_check
          %p257 = pneg %p127
        $region14: #{tpu_custom_call.1} parent=11 // pred_check_branch
          %259 = sbr.rel (%p257) target = $region16
        $region15: #{tpu_custom_call.1} parent=11 // pred_region
          %s261 = ssub.s32 256, 256
          %262 = vsyncadd [#allocation9], %s261
          %s263 = sshll.u32 [#allocation8], 4
          %s264 = int_to_ptr.vmem [resolvable:$true] %s263
          %269 = dma.hbm_to_vmem [thread:$0]  %s3, 256, %s264, [#allocation9], 64, 64, 4
        $region16: #{tpu_custom_call.1} parent=11 // pred_fallthru
          _
        // Predicated region
        $region17: #{tpu_custom_call.1} parent=11 // pred_check
          %p270 = pneg %p148
        $region18: #{tpu_custom_call.1} parent=11 // pred_check_branch
          %272 = sbr.rel (%p270) target = $region20
        $region19: #{tpu_custom_call.1} parent=11 // pred_region
          _
        $region20: #{tpu_custom_call.1} parent=11 // pred_fallthru
          _
        // Predicated region
        $region21: #{tpu_custom_call.1} parent=11 // pred_check
          %p273 = pneg %p169
        $region22: #{tpu_custom_call.1} parent=11 // pred_check_branch
          %275 = sbr.rel (%p273) target = $region24
        $region23: #{tpu_custom_call.1} parent=11 // pred_region
          %s277 = ssub.s32 256, 256
          %278 = vsyncadd [#allocation9], %s277
          %s279 = sshll.u32 [#allocation10], 4
          %s280 = int_to_ptr.vmem [resolvable:$true] %s279
          %285 = dma.hbm_to_vmem [thread:$0]  %s5, 256, %s280, [#allocation9], 64, 64, 4
        $region24: #{tpu_custom_call.1} parent=11 // pred_fallthru
          _
        // Predicated region
        $region25: #{tpu_custom_call.1} parent=11 // pred_check
          %p286 = pneg %p190
        $region26: #{tpu_custom_call.1} parent=11 // pred_check_branch
          %288 = sbr.rel (%p286) target = $region28
        $region27: #{tpu_custom_call.1} parent=11 // pred_region
          _
        $region28: #{tpu_custom_call.1} parent=11 // pred_fallthru
          _
      $region12: #{tpu_custom_call.1} parent=5 // pred_fallthru
        _
      %p289 = scmp.lt.s32.totalorder %s28, 2
      // Predicated region
      $region29: #{tpu_custom_call.1} parent=5 // pred_check
        %p290 = pneg %p289
      $region30: #{tpu_custom_call.1} parent=5 // pred_check_branch
        %292 = sbr.rel (%p290) target = $region32
      $region31: #{tpu_custom_call.1} parent=5 // pred_region
        // Predicated region
        $region33: #{tpu_custom_call.1} parent=31 // pred_check
          %p293 = pneg %p48
        $region34: #{tpu_custom_call.1} parent=31 // pred_check_branch
          %295 = sbr.rel (%p293) target = $region36
        $region35: #{tpu_custom_call.1} parent=31 // pred_region
          %s296 = sand.u32 %s38, 1
          %s297 = scalar_lea.sflag [#allocation3], %s296
          %s298 = sand.u32 %s38, 1
          %s299 = smul.addr %s298, 8
          %s300 = scalar_lea.vmem [#allocation2], %s299
          %s302 = ssub.s32 128, 128
          %303 = vsyncadd %s297, %s302
          %s304 = smul.addr %s28, 128
          %s305 = scalar_lea.hbm %s0, %s304
          %s307 = sshll.u32 %s300, 4
          %s308 = int_to_ptr.vmem [resolvable:$true] %s307
          %310 = dma.hbm_to_vmem [thread:$0]  %s305, 128, %s308, %s297
        $region36: #{tpu_custom_call.1} parent=31 // pred_fallthru
          _
        // Predicated region
        $region37: #{tpu_custom_call.1} parent=31 // pred_check
          %p311 = pneg %p74
        $region38: #{tpu_custom_call.1} parent=31 // pred_check_branch
          %313 = sbr.rel (%p311) target = $region40
        $region39: #{tpu_custom_call.1} parent=31 // pred_region
          %s314 = sand.u32 %s28, 1
          %s315 = scalar_lea.sflag [#allocation6], %s314
          %s316 = sand.u32 %s64, 1
          %s317 = smul.addr %s316, 16
          %s318 = scalar_lea.vmem [#allocation5], %s317
          %s320 = ssub.s32 256, 256
          %321 = vsyncadd %s315, %s320
          %s322 = smul.addr %s28, 2
          %s323 = smul.addr %s322, 128
          %s324 = scalar_lea.hbm %s1, %s323
          %s325 = sshll.u32 %s318, 4
          %s326 = int_to_ptr.vmem [resolvable:$true] %s325
          %331 = dma.hbm_to_vmem [thread:$0]  %s324, 256, %s326, %s315, 128, 128, 8
        $region40: #{tpu_custom_call.1} parent=31 // pred_fallthru
          _
        // Predicated region
        $region41: #{tpu_custom_call.1} parent=31 // pred_check
          %p332 = pneg %p100
        $region42: #{tpu_custom_call.1} parent=31 // pred_check_branch
          %334 = sbr.rel (%p332) target = $region44
        $region43: #{tpu_custom_call.1} parent=31 // pred_region
          %s335 = sand.u32 %s28, 1
          %s336 = scalar_lea.sflag [#allocation6], %s335
          %s337 = sand.u32 %s90, 1
          %s338 = smul.addr %s337, 16
          %s339 = scalar_lea.vmem [#allocation7], %s338
          %s341 = ssub.s32 256, 256
          %342 = vsyncadd %s336, %s341
          %s343 = smul.addr %s28, 2
          %s344 = smul.addr %s343, 128
          %s345 = scalar_lea.hbm %s2, %s344
          %s346 = sshll.u32 %s339, 4
          %s347 = int_to_ptr.vmem [resolvable:$true] %s346
          %352 = dma.hbm_to_vmem [thread:$0]  %s345, 256, %s347, %s336, 128, 128, 8
        $region44: #{tpu_custom_call.1} parent=31 // pred_fallthru
          _
      $region32: #{tpu_custom_call.1} parent=5 // pred_fallthru
        _
      %p353 = scmp.le.s32.totalorder 1, %s28
      %p354 = scmp.lt.s32.totalorder %s28, 3
      %p355 = pnand %p353, %p354
      %p356 = pneg %p355
      // Predicated region
      $region45: #{tpu_custom_call.1} parent=5 // pred_check
        _
      $region46: #{tpu_custom_call.1} parent=5 // pred_check_branch
        %358 = sbr.rel (%p355) target = $region48
      $region47: #{tpu_custom_call.1} parent=5 // pred_region
        %s359 = ssub.s32 %s28, 1
        %s360 = sand.u32 %s41, 1
        %s361 = scalar_lea.sflag [#allocation3], %s360
        %s362 = sand.u32 %s41, 1
        %s363 = smul.addr %s362, 8
        %s364 = scalar_lea.vmem [#allocation2], %s363
        // Predicated region
        $region49: #{tpu_custom_call.1} parent=47 // pred_check
          %p365 = pneg %p54
        $region50: #{tpu_custom_call.1} parent=47 // pred_check_branch
          %367 = sbr.rel (%p365) target = $region52
        $region51: #{tpu_custom_call.1} parent=47 // pred_region
          %368 = dma.done %s361, 128
        $region52: #{tpu_custom_call.1} parent=47 // pred_fallthru
          _
        %s369 = sand.u32 %s33, 1
        %s370 = scalar_lea.sflag [#allocation6], %s369
        %s371 = sand.u32 %s67, 1
        %s372 = smul.addr %s371, 16
        %s373 = scalar_lea.vmem [#allocation5], %s372
        // Predicated region
        $region53: #{tpu_custom_call.1} parent=47 // pred_check
          %p374 = pneg %p80
        $region54: #{tpu_custom_call.1} parent=47 // pred_check_branch
          %376 = sbr.rel (%p374) target = $region56
        $region55: #{tpu_custom_call.1} parent=47 // pred_region
          %377 = dma.done %s370, 256
        $region56: #{tpu_custom_call.1} parent=47 // pred_fallthru
          _
        %s378 = sand.u32 %s33, 1
        %s379 = scalar_lea.sflag [#allocation6], %s378
        %s380 = sand.u32 %s93, 1
        %s381 = smul.addr %s380, 16
        %s382 = scalar_lea.vmem [#allocation7], %s381
        // Predicated region
        $region57: #{tpu_custom_call.1} parent=47 // pred_check
          %p383 = pneg %p106
        $region58: #{tpu_custom_call.1} parent=47 // pred_check_branch
          %385 = sbr.rel (%p383) target = $region60
        $region59: #{tpu_custom_call.1} parent=47 // pred_region
          %386 = dma.done %s379, 256
        $region60: #{tpu_custom_call.1} parent=47 // pred_fallthru
          _
        // Predicated region
        $region61: #{tpu_custom_call.1} parent=47 // pred_check
          %p387 = pneg %p127
        $region62: #{tpu_custom_call.1} parent=47 // pred_check_branch
          %389 = sbr.rel (%p387) target = $region64
        $region63: #{tpu_custom_call.1} parent=47 // pred_region
          %390 = dma.done [#allocation9], 256
        $region64: #{tpu_custom_call.1} parent=47 // pred_fallthru
          _
        // Predicated region
        $region65: #{tpu_custom_call.1} parent=47 // pred_check
          %p391 = pneg %p169
        $region66: #{tpu_custom_call.1} parent=47 // pred_check_branch
          %393 = sbr.rel (%p391) target = $region68
        $region67: #{tpu_custom_call.1} parent=47 // pred_region
          %394 = dma.done [#allocation9], 256
        $region68: #{tpu_custom_call.1} parent=47 // pred_fallthru
          _
        %s395 = sand.u32 %s41, 1
        %s396 = scalar_lea.sflag [#allocation3], %s395
        %s397 = sand.u32 %s41, 1
        %s398 = smul.addr %s397, 8
        %s399 = scalar_lea.vmem [#allocation2], %s398
        %p400 = pneg %p54
        %p401 = pneg %p51
        %s402 = sand.u32 %s33, 1
        %s403 = scalar_lea.sflag [#allocation6], %s402
        %s404 = sand.u32 %s67, 1
        %s405 = smul.addr %s404, 16
        %s406 = scalar_lea.vmem [#allocation5], %s405
        %p407 = pneg %p80
        %p408 = pneg %p77
        %s409 = sand.u32 %s33, 1
        %s410 = scalar_lea.sflag [#allocation6], %s409
        %s411 = sand.u32 %s93, 1
        %s412 = smul.addr %s411, 16
        %s413 = scalar_lea.vmem [#allocation7], %s412
        %p414 = pneg %p106
        %p415 = pneg %p103
        %p416 = pneg %p127
        %p417 = pneg %p124
        %p418 = pneg %p148
        %p419 = pneg %p145
        %p420 = pneg %p169
        %p421 = pneg %p166
        %p422 = pneg %p190
        %p423 = pneg %p187
        %p424 = pneg %p216
        %p425 = pneg %p213
        %s426 = sand.u32 %s203, 1
        %s427 = scalar_lea.sflag [#allocation4], %s426
        %s428 = sand.u32 %s203, 1
        %s429 = smul.addr %s428, 8
        %s430 = scalar_lea.vmem [#allocation11], %s429
        %p431 = pneg %p242
        %p432 = pneg %p239
        %s433 = sand.u32 %s229, 1
        %s434 = scalar_lea.sflag [#allocation13], %s433
        %s435 = sand.u32 %s229, 1
        %s436 = smul.addr %s435, 32
        %s437 = scalar_lea.vmem [#allocation12], %s436
        %v439 = vld [vmem:[#allocation8] sm:$0xf]
        %v440 = vld [vmem:[#allocation8 + $0x4] sm:$0xf]
        %v441 = vld [vmem:[#allocation8 + $0x8] sm:$0xf]
        %v442 = vld [vmem:[#allocation8 + $0xc] sm:$0xf]
        %v443 = vld [vmem:[%s4] sm:$0x1]
        %v444 = vld [vmem:[%s364] sm:$0xff]
        %v445 = vpack.c.bf16 %v444, %v444
        %v446 = vld [vmem:[%s373] sm:$0xff]
        %v447 = vld [vmem:[%s373 + $0x8] sm:$0xff]
        %v448 = vpack.c.bf16 %v447, %v446
        %v449 = vld [vmem:[%s382] sm:$0xff]
        %v450 = vld [vmem:[%s382 + $0x8] sm:$0xff]
        %v451 = vpack.c.bf16 %v450, %v449
        %v453 = vlaneseq
        %v454 = vshrl.u32 %v453, 7
        %v455 = vsub.s32 0, %v454
        %v456 = vrot.slane %v443, %v455
        %v462 = vunpack.c.l.b16 %v439
        %v463 = vunpack.c.l.b16 %v440
        %v464 = vunpack.c.l.b16 %v441
        %v465 = vunpack.c.l.b16 %v442
        %v466 = vpack.c.b16 %v463, %v462
        %v467 = vpack.c.b16 %v465, %v464
        %vm470 = vcmask 261120
        %v472 = vsel %vm470, %v445, 0
        %474 = vmatprep.subr.bf16.mxu0 0
        %475 = vmatpush1.bf16.msra.mxu0 0
        %476 = vmatprep.subr.bf16.mxu0 0
        %477 = vmatpush1.bf16.msra.mxu0 0
        %478 = vmatprep.subr.bf16.mxu0 0
        %479 = vmatpush1.bf16.msra.mxu0 0
        %480 = vmatprep.subr.bf16.mxu0 0
        %481 = vmatpush1.bf16.msra.mxu0 0
        %482 = vmatprep.subr.bf16.mxu0 0
        %483 = vmatpush1.bf16.msra.mxu0 0
        %484 = vmatprep.subr.bf16.mxu0 0
        %485 = vmatpush1.bf16.msra.mxu0 0
        %486 = vmatprep.subr.bf16.mxu0 0
        %487 = vmatpush1.bf16.msra.mxu0 %v467
        %488 = vmatprep.subr.bf16.mxu0 0
        %489 = vmatpush1.bf16.msra.mxu0 %v466
        %490 = vmatprep.subr.bf16.mxu0 0
        %491 = vmatpush2.bf16.msra.mxu0 0
        %492 = vmatprep.subr.bf16.mxu0 0
        %493 = vmatpush2.bf16.msra.mxu0 0
        %494 = vmatprep.subr.bf16.mxu0 0
        %495 = vmatpush2.bf16.msra.mxu0 0
        %496 = vmatprep.subr.bf16.mxu0 0
        %497 = vmatpush2.bf16.msra.mxu0 0
        %498 = vmatprep.subr.bf16.mxu0 0
        %499 = vmatpush2.bf16.msra.mxu0 0
        %500 = vmatprep.subr.bf16.mxu0 0
        %501 = vmatpush2.bf16.msra.mxu0 0
        %502 = vmatprep.subr.bf16.mxu0 0
        %503 = vmatpush2.bf16.msra.mxu0 0
        %504 = vmatprep.subr.bf16.mxu0 0
        %505 = vmatpush2.bf16.msra.mxu0 0
        %506 = vmatprep.mubr.bf16.mxu0 0
        %507 = vmatmul.mubr.bf16.gmra.mxu0 %v472
        %v508 = vpop.f32.mrf.mxu0
        %v509 = vadd.f32 %v456, %v508
        %v510 = vpop.f32.mrf.mxu0
        %v511 = vpop.f32.mrf.mxu0
        %v512 = vpop.f32.mrf.mxu0
        %513 = vdwg.mxu0
        %514 = vrot.lane.b32.xlu0 %v466, 96
        %v515 = vpop.permute.xlu0 %514
        %516 = vrot.lane.b32.xlu0 %v467, 96
        %v517 = vpop.permute.xlu0 %516
        %520 = vrot.lane.b32.xlu0 %v456, 96
        %v521 = vpop.permute.xlu0 %520
        %v524 = vsel %vm470, %v448, 0
        %526 = vmatprep.subr.bf16.mxu0 0
        %527 = vmatpush1.bf16.msra.mxu0 0
        %528 = vmatprep.subr.bf16.mxu0 0
        %529 = vmatpush1.bf16.msra.mxu0 0
        %530 = vmatprep.subr.bf16.mxu0 0
        %531 = vmatpush1.bf16.msra.mxu0 0
        %532 = vmatprep.subr.bf16.mxu0 0
        %533 = vmatpush1.bf16.msra.mxu0 0
        %534 = vmatprep.subr.bf16.mxu0 0
        %535 = vmatpush1.bf16.msra.mxu0 0
        %536 = vmatprep.subr.bf16.mxu0 0
        %537 = vmatpush1.bf16.msra.mxu0 0
        %538 = vmatprep.subr.bf16.mxu0 0
        %539 = vmatpush1.bf16.msra.mxu0 %v517
        %540 = vmatprep.subr.bf16.mxu0 0
        %541 = vmatpush1.bf16.msra.mxu0 %v515
        %542 = vmatprep.subr.bf16.mxu0 0
        %543 = vmatpush2.bf16.msra.mxu0 0
        %544 = vmatprep.subr.bf16.mxu0 0
        %545 = vmatpush2.bf16.msra.mxu0 0
        %546 = vmatprep.subr.bf16.mxu0 0
        %547 = vmatpush2.bf16.msra.mxu0 0
        %548 = vmatprep.subr.bf16.mxu0 0
        %549 = vmatpush2.bf16.msra.mxu0 0
        %550 = vmatprep.subr.bf16.mxu0 0
        %551 = vmatpush2.bf16.msra.mxu0 0
        %552 = vmatprep.subr.bf16.mxu0 0
        %553 = vmatpush2.bf16.msra.mxu0 0
        %554 = vmatprep.subr.bf16.mxu0 0
        %555 = vmatpush2.bf16.msra.mxu0 0
        %556 = vmatprep.subr.bf16.mxu0 0
        %557 = vmatpush2.bf16.msra.mxu0 0
        %558 = vmatprep.mubr.bf16.mxu0 0
        %559 = vmatmul.mubr.bf16.gmra.mxu0 %v524
        %v560 = vpop.f32.mrf.mxu0
        %v561 = vadd.f32 %v521, %v560
        %v562 = vpop.f32.mrf.mxu0
        %v563 = vpop.f32.mrf.mxu0
        %v564 = vadd.f32 %v521, %v563
        %v565 = vpop.f32.mrf.mxu0
        %566 = vdwg.mxu0
        %567 = vrot.lane.b32.xlu0 %v466, 64
        %v568 = vpop.permute.xlu0 %567
        %569 = vrot.lane.b32.xlu0 %v467, 64
        %v570 = vpop.permute.xlu0 %569
        %573 = vrot.lane.b32.xlu0 %v456, 64
        %v574 = vpop.permute.xlu0 %573
        %v577 = vsel %vm470, %v451, 0
        %579 = vmatprep.subr.bf16.mxu0 0
        %580 = vmatpush1.bf16.msra.mxu0 0
        %581 = vmatprep.subr.bf16.mxu0 0
        %582 = vmatpush1.bf16.msra.mxu0 0
        %583 = vmatprep.subr.bf16.mxu0 0
        %584 = vmatpush1.bf16.msra.mxu0 0
        %585 = vmatprep.subr.bf16.mxu0 0
        %586 = vmatpush1.bf16.msra.mxu0 0
        %587 = vmatprep.subr.bf16.mxu0 0
        %588 = vmatpush1.bf16.msra.mxu0 0
        %589 = vmatprep.subr.bf16.mxu0 0
        %590 = vmatpush1.bf16.msra.mxu0 0
        %591 = vmatprep.subr.bf16.mxu0 0
        %592 = vmatpush1.bf16.msra.mxu0 %v570
        %593 = vmatprep.subr.bf16.mxu0 0
        %594 = vmatpush1.bf16.msra.mxu0 %v568
        %595 = vmatprep.subr.bf16.mxu0 0
        %596 = vmatpush2.bf16.msra.mxu0 0
        %597 = vmatprep.subr.bf16.mxu0 0
        %598 = vmatpush2.bf16.msra.mxu0 0
        %599 = vmatprep.subr.bf16.mxu0 0
        %600 = vmatpush2.bf16.msra.mxu0 0
        %601 = vmatprep.subr.bf16.mxu0 0
        %602 = vmatpush2.bf16.msra.mxu0 0
        %603 = vmatprep.subr.bf16.mxu0 0
        %604 = vmatpush2.bf16.msra.mxu0 0
        %605 = vmatprep.subr.bf16.mxu0 0
        %606 = vmatpush2.bf16.msra.mxu0 0
        %607 = vmatprep.subr.bf16.mxu0 0
        %608 = vmatpush2.bf16.msra.mxu0 0
        %609 = vmatprep.subr.bf16.mxu0 0
        %610 = vmatpush2.bf16.msra.mxu0 0
        %611 = vmatprep.mubr.bf16.mxu0 0
        %612 = vmatmul.mubr.bf16.gmra.mxu0 %v577
        %v613 = vpop.f32.mrf.mxu0
        %v614 = vadd.f32 %v574, %v613
        %v615 = vpop.f32.mrf.mxu0
        %v616 = vpop.f32.mrf.mxu0
        %v617 = vadd.f32 %v574, %v616
        %v618 = vpop.f32.mrf.mxu0
        %619 = vdwg.mxu0
        %v620 = vld [vmem:[#allocation10] sm:$0xf]
        %v621 = vld [vmem:[#allocation10 + $0x4] sm:$0xf]
        %v622 = vld [vmem:[#allocation10 + $0x8] sm:$0xf]
        %v623 = vld [vmem:[#allocation10 + $0xc] sm:$0xf]
        %v624 = vld [vmem:[%s6] sm:$0x1]
        %626 = vrot.lane.b32.xlu0 %v509, 120
        %v627 = vpop.permute.xlu0 %626
        %629 = vrot.lane.b32.xlu0 %v509, 112
        %v630 = vpop.permute.xlu0 %629
        %632 = vrot.lane.b32.xlu0 %v509, 104
        %v633 = vpop.permute.xlu0 %632
        %v635 = vpack.c.bf16 %v509, %v509
        %v636 = vpack.c.bf16 %v627, %v627
        %v637 = vpack.c.bf16 %v630, %v630
        %v638 = vpack.c.bf16 %v633, %v633
        %641 = vrot.lane.b32.xlu0 %v561, 120
        %v642 = vpop.permute.xlu0 %641
        %643 = vrot.lane.b32.xlu0 %v564, 120
        %v644 = vpop.permute.xlu0 %643
        %647 = vrot.lane.b32.xlu0 %v561, 112
        %v648 = vpop.permute.xlu0 %647
        %649 = vrot.lane.b32.xlu0 %v564, 112
        %v650 = vpop.permute.xlu0 %649
        %653 = vrot.lane.b32.xlu0 %v561, 104
        %v654 = vpop.permute.xlu0 %653
        %655 = vrot.lane.b32.xlu0 %v564, 104
        %v656 = vpop.permute.xlu0 %655
        %v659 = vpack.c.bf16 %v564, %v561
        %v660 = vpack.c.bf16 %v644, %v642
        %v661 = vpack.c.bf16 %v650, %v648
        %v662 = vpack.c.bf16 %v656, %v654
        %665 = vrot.lane.b32.xlu0 %v614, 120
        %v666 = vpop.permute.xlu0 %665
        %667 = vrot.lane.b32.xlu0 %v617, 120
        %v668 = vpop.permute.xlu0 %667
        %671 = vrot.lane.b32.xlu0 %v614, 112
        %v672 = vpop.permute.xlu0 %671
        %673 = vrot.lane.b32.xlu0 %v617, 112
        %v674 = vpop.permute.xlu0 %673
        %677 = vrot.lane.b32.xlu0 %v614, 104
        %v678 = vpop.permute.xlu0 %677
        %679 = vrot.lane.b32.xlu0 %v617, 104
        %v680 = vpop.permute.xlu0 %679
        %v683 = vpack.c.bf16 %v617, %v614
        %v684 = vpack.c.bf16 %v668, %v666
        %v685 = vpack.c.bf16 %v674, %v672
        %v686 = vpack.c.bf16 %v680, %v678
        %vm687 = vcmask 64512
        %v689 = vsel %vm687, %v635, 0
        %v692 = vsel %vm687, %v659, 0
        %694 = vmatprep.subr.bf16.mxu0 0
        %695 = vmatpush1.bf16.xpose.msra.mxu0 0
        %696 = vmatprep.subr.bf16.mxu0 0
        %697 = vmatpush1.bf16.xpose.msra.mxu0 0
        %698 = vmatprep.subr.bf16.mxu0 0
        %699 = vmatpush1.bf16.xpose.msra.mxu0 0
        %700 = vmatprep.subr.bf16.mxu0 0
        %701 = vmatpush1.bf16.xpose.msra.mxu0 0
        %702 = vmatprep.subr.bf16.mxu0 0
        %703 = vmatpush1.bf16.xpose.msra.mxu0 0
        %704 = vmatprep.subr.bf16.mxu0 0
        %705 = vmatpush1.bf16.xpose.msra.mxu0 0
        %706 = vmatprep.subr.bf16.mxu0 0
        %707 = vmatpush1.bf16.xpose.msra.mxu0 0
        %708 = vmatprep.subr.bf16.mxu0 0
        %709 = vmatpush1.bf16.xpose.msra.mxu0 %v692
        %710 = vmatprep.subr.bf16.mxu0 0
        %711 = vmatpush2.bf16.xpose.msra.mxu0 0
        %712 = vmatprep.subr.bf16.mxu0 0
        %713 = vmatpush2.bf16.xpose.msra.mxu0 0
        %714 = vmatprep.subr.bf16.mxu0 0
        %715 = vmatpush2.bf16.xpose.msra.mxu0 0
        %716 = vmatprep.subr.bf16.mxu0 0
        %717 = vmatpush2.bf16.xpose.msra.mxu0 0
        %718 = vmatprep.subr.bf16.mxu0 0
        %719 = vmatpush2.bf16.xpose.msra.mxu0 0
        %720 = vmatprep.subr.bf16.mxu0 0
        %721 = vmatpush2.bf16.xpose.msra.mxu0 0
        %722 = vmatprep.subr.bf16.mxu0 0
        %723 = vmatpush2.bf16.xpose.msra.mxu0 0
        %724 = vmatprep.subr.bf16.mxu0 0
        %725 = vmatpush2.bf16.xpose.msra.mxu0 0
        %726 = vmatprep.mubr.bf16.mxu0 0
        %727 = vmatmul.mubr.bf16.gmra.mxu0 %v689
        %v728 = vpop.f32.mrf.mxu0
        %v729 = vadd.f32 0.0, %v728
        %v730 = vpop.f32.mrf.mxu0
        %v731 = vpop.f32.mrf.mxu0
        %v732 = vpop.f32.mrf.mxu0
        %733 = vdwg.mxu0
        %v735 = vsel %vm687, %v636, 0
        %v738 = vsel %vm687, %v660, 0
        %740 = vmatprep.subr.bf16.mxu0 0
        %741 = vmatpush1.bf16.xpose.msra.mxu0 0
        %742 = vmatprep.subr.bf16.mxu0 0
        %743 = vmatpush1.bf16.xpose.msra.mxu0 0
        %744 = vmatprep.subr.bf16.mxu0 0
        %745 = vmatpush1.bf16.xpose.msra.mxu0 0
        %746 = vmatprep.subr.bf16.mxu0 0
        %747 = vmatpush1.bf16.xpose.msra.mxu0 0
        %748 = vmatprep.subr.bf16.mxu0 0
        %749 = vmatpush1.bf16.xpose.msra.mxu0 0
        %750 = vmatprep.subr.bf16.mxu0 0
        %751 = vmatpush1.bf16.xpose.msra.mxu0 0
        %752 = vmatprep.subr.bf16.mxu0 0
        %753 = vmatpush1.bf16.xpose.msra.mxu0 0
        %754 = vmatprep.subr.bf16.mxu0 0
        %755 = vmatpush1.bf16.xpose.msra.mxu0 %v738
        %756 = vmatprep.subr.bf16.mxu0 0
        %757 = vmatpush2.bf16.xpose.msra.mxu0 0
        %758 = vmatprep.subr.bf16.mxu0 0
        %759 = vmatpush2.bf16.xpose.msra.mxu0 0
        %760 = vmatprep.subr.bf16.mxu0 0
        %761 = vmatpush2.bf16.xpose.msra.mxu0 0
        %762 = vmatprep.subr.bf16.mxu0 0
        %763 = vmatpush2.bf16.xpose.msra.mxu0 0
        %764 = vmatprep.subr.bf16.mxu0 0
        %765 = vmatpush2.bf16.xpose.msra.mxu0 0
        %766 = vmatprep.subr.bf16.mxu0 0
        %767 = vmatpush2.bf16.xpose.msra.mxu0 0
        %768 = vmatprep.subr.bf16.mxu0 0
        %769 = vmatpush2.bf16.xpose.msra.mxu0 0
        %770 = vmatprep.subr.bf16.mxu0 0
        %771 = vmatpush2.bf16.xpose.msra.mxu0 0
        %772 = vmatprep.mubr.bf16.mxu0 0
        %773 = vmatmul.mubr.bf16.gmra.mxu0 %v735
        %v774 = vpop.f32.mrf.mxu0
        %v775 = vadd.f32 0.0, %v774
        %v776 = vpop.f32.mrf.mxu0
        %v777 = vpop.f32.mrf.mxu0
        %v778 = vpop.f32.mrf.mxu0
        %779 = vdwg.mxu0
        %v781 = vsel %vm687, %v637, 0
        %v784 = vsel %vm687, %v661, 0
        %786 = vmatprep.subr.bf16.mxu0 0
        %787 = vmatpush1.bf16.xpose.msra.mxu0 0
        %788 = vmatprep.subr.bf16.mxu0 0
        %789 = vmatpush1.bf16.xpose.msra.mxu0 0
        %790 = vmatprep.subr.bf16.mxu0 0
        %791 = vmatpush1.bf16.xpose.msra.mxu0 0
        %792 = vmatprep.subr.bf16.mxu0 0
        %793 = vmatpush1.bf16.xpose.msra.mxu0 0
        %794 = vmatprep.subr.bf16.mxu0 0
        %795 = vmatpush1.bf16.xpose.msra.mxu0 0
        %796 = vmatprep.subr.bf16.mxu0 0
        %797 = vmatpush1.bf16.xpose.msra.mxu0 0
        %798 = vmatprep.subr.bf16.mxu0 0
        %799 = vmatpush1.bf16.xpose.msra.mxu0 0
        %800 = vmatprep.subr.bf16.mxu0 0
        %801 = vmatpush1.bf16.xpose.msra.mxu0 %v784
        %802 = vmatprep.subr.bf16.mxu0 0
        %803 = vmatpush2.bf16.xpose.msra.mxu0 0
        %804 = vmatprep.subr.bf16.mxu0 0
        %805 = vmatpush2.bf16.xpose.msra.mxu0 0
        %806 = vmatprep.subr.bf16.mxu0 0
        %807 = vmatpush2.bf16.xpose.msra.mxu0 0
        %808 = vmatprep.subr.bf16.mxu0 0
        %809 = vmatpush2.bf16.xpose.msra.mxu0 0
        %810 = vmatprep.subr.bf16.mxu0 0
        %811 = vmatpush2.bf16.xpose.msra.mxu0 0
        %812 = vmatprep.subr.bf16.mxu0 0
        %813 = vmatpush2.bf16.xpose.msra.mxu0 0
        %814 = vmatprep.subr.bf16.mxu0 0
        %815 = vmatpush2.bf16.xpose.msra.mxu0 0
        %816 = vmatprep.subr.bf16.mxu0 0
        %817 = vmatpush2.bf16.xpose.msra.mxu0 0
        %818 = vmatprep.mubr.bf16.mxu0 0
        %819 = vmatmul.mubr.bf16.gmra.mxu0 %v781
        %v820 = vpop.f32.mrf.mxu0
        %v821 = vadd.f32 0.0, %v820
        %v822 = vpop.f32.mrf.mxu0
        %v823 = vpop.f32.mrf.mxu0
        %v824 = vpop.f32.mrf.mxu0
        %825 = vdwg.mxu0
        %v827 = vsel %vm687, %v638, 0
        %v830 = vsel %vm687, %v662, 0
        %832 = vmatprep.subr.bf16.mxu0 0
        %833 = vmatpush1.bf16.xpose.msra.mxu0 0
        %834 = vmatprep.subr.bf16.mxu0 0
        %835 = vmatpush1.bf16.xpose.msra.mxu0 0
        %836 = vmatprep.subr.bf16.mxu0 0
        %837 = vmatpush1.bf16.xpose.msra.mxu0 0
        %838 = vmatprep.subr.bf16.mxu0 0
        %839 = vmatpush1.bf16.xpose.msra.mxu0 0
        %840 = vmatprep.subr.bf16.mxu0 0
        %841 = vmatpush1.bf16.xpose.msra.mxu0 0
        %842 = vmatprep.subr.bf16.mxu0 0
        %843 = vmatpush1.bf16.xpose.msra.mxu0 0
        %844 = vmatprep.subr.bf16.mxu0 0
        %845 = vmatpush1.bf16.xpose.msra.mxu0 0
        %846 = vmatprep.subr.bf16.mxu0 0
        %847 = vmatpush1.bf16.xpose.msra.mxu0 %v830
        %848 = vmatprep.subr.bf16.mxu0 0
        %849 = vmatpush2.bf16.xpose.msra.mxu0 0
        %850 = vmatprep.subr.bf16.mxu0 0
        %851 = vmatpush2.bf16.xpose.msra.mxu0 0
        %852 = vmatprep.subr.bf16.mxu0 0
        %853 = vmatpush2.bf16.xpose.msra.mxu0 0
        %854 = vmatprep.subr.bf16.mxu0 0
        %855 = vmatpush2.bf16.xpose.msra.mxu0 0
        %856 = vmatprep.subr.bf16.mxu0 0
        %857 = vmatpush2.bf16.xpose.msra.mxu0 0
        %858 = vmatprep.subr.bf16.mxu0 0
        %859 = vmatpush2.bf16.xpose.msra.mxu0 0
        %860 = vmatprep.subr.bf16.mxu0 0
        %861 = vmatpush2.bf16.xpose.msra.mxu0 0
        %862 = vmatprep.subr.bf16.mxu0 0
        %863 = vmatpush2.bf16.xpose.msra.mxu0 0
        %864 = vmatprep.mubr.bf16.mxu0 0
        %865 = vmatmul.mubr.bf16.gmra.mxu0 %v827
        %v866 = vpop.f32.mrf.mxu0
        %v867 = vadd.f32 0.0, %v866
        %v868 = vpop.f32.mrf.mxu0
        %v869 = vpop.f32.mrf.mxu0
        %v870 = vpop.f32.mrf.mxu0
        %871 = vdwg.mxu0
        %vm872 = vcmask 130048
        %v873 = vsel %vm872, %v729, -inf
        %874 = vmax.xlane.f32.xlu0 %v873
        %v875 = vpop.xlane.xlu0 %874
        %v876 = vsel %vm872, %v775, -inf
        %877 = vmax.xlane.f32.xlu0 %v876
        %v878 = vpop.xlane.xlu0 %877
        %v879 = vsel %vm872, %v821, -inf
        %880 = vmax.xlane.f32.xlu0 %v879
        %v881 = vpop.xlane.xlu0 %880
        %v882 = vsel %vm872, %v867, -inf
        %883 = vmax.xlane.f32.xlu0 %v882
        %v884 = vpop.xlane.xlu0 %883
        %v885 = vsub.f32 %v729, %v875
        %v886 = vsub.f32 %v775, %v878
        %v887 = vsub.f32 %v821, %v881
        %v888 = vsub.f32 %v867, %v884
        %v889 = vmul.f32 %v885, 1.442695
        %v890 = vpow.pop %v889
        %v891 = vmul.f32 %v886, 1.442695
        %v892 = vpow.pop %v891
        %v893 = vmul.f32 %v887, 1.442695
        %v894 = vpow.pop %v893
        %v895 = vmul.f32 %v888, 1.442695
        %v896 = vpow.pop %v895
        %v897 = vsel %vm872, %v890, 0.0
        %898 = vadd.xlane.f32.xlu0 %v897
        %v899 = vpop.xlane.xlu0 %898
        %v900 = vsel %vm872, %v892, 0.0
        %901 = vadd.xlane.f32.xlu0 %v900
        %v902 = vpop.xlane.xlu0 %901
        %v903 = vsel %vm872, %v894, 0.0
        %904 = vadd.xlane.f32.xlu0 %v903
        %v905 = vpop.xlane.xlu0 %904
        %v906 = vsel %vm872, %v896, 0.0
        %907 = vadd.xlane.f32.xlu0 %v906
        %v908 = vpop.xlane.xlu0 %907
        %v909 = vrcp.pop %v899
        %v910 = vrcp.pop %v902
        %v911 = vrcp.pop %v905
        %v912 = vrcp.pop %v908
        %v913 = vmul.f32 %v890, %v909
        %v914 = vmul.f32 %v892, %v910
        %v915 = vmul.f32 %v894, %v911
        %v916 = vmul.f32 %v896, %v912
        %917 = vst.msk [vmem:[%s437] sm:$0xff] %vm872, %v913
        %918 = vst.msk [vmem:[%s437 + $0x8] sm:$0xff] %vm872, %v914
        %919 = vst.msk [vmem:[%s437 + $0x10] sm:$0xff] %vm872, %v915
        %920 = vst.msk [vmem:[%s437 + $0x18] sm:$0xff] %vm872, %v916
        %v921 = vpack.c.bf16 %v913, %v913
        %v922 = vpack.c.bf16 %v914, %v914
        %v923 = vpack.c.bf16 %v915, %v915
        %v924 = vpack.c.bf16 %v916, %v916
        %v926 = vsel %vm872, %v921, 0
        %928 = vmatprep.subr.bf16.mxu0 0
        %929 = vmatpush1.bf16.msra.mxu0 0
        %930 = vmatprep.subr.bf16.mxu0 0
        %931 = vmatpush1.bf16.msra.mxu0 0
        %932 = vmatprep.subr.bf16.mxu0 0
        %933 = vmatpush1.bf16.msra.mxu0 0
        %934 = vmatprep.subr.bf16.mxu0 0
        %935 = vmatpush1.bf16.msra.mxu0 0
        %936 = vmatprep.subr.bf16.mxu0 0
        %937 = vmatpush1.bf16.msra.mxu0 0
        %938 = vmatprep.subr.bf16.mxu0 0
        %939 = vmatpush1.bf16.msra.mxu0 0
        %940 = vmatprep.subr.bf16.mxu0 0
        %941 = vmatpush1.bf16.msra.mxu0 0
        %942 = vmatprep.subr.bf16.mxu0 0
        %943 = vmatpush1.bf16.msra.mxu0 %v683
        %944 = vmatprep.subr.bf16.mxu0 0
        %945 = vmatpush2.bf16.msra.mxu0 0
        %946 = vmatprep.subr.bf16.mxu0 0
        %947 = vmatpush2.bf16.msra.mxu0 0
        %948 = vmatprep.subr.bf16.mxu0 0
        %949 = vmatpush2.bf16.msra.mxu0 0
        %950 = vmatprep.subr.bf16.mxu0 0
        %951 = vmatpush2.bf16.msra.mxu0 0
        %952 = vmatprep.subr.bf16.mxu0 0
        %953 = vmatpush2.bf16.msra.mxu0 0
        %954 = vmatprep.subr.bf16.mxu0 0
        %955 = vmatpush2.bf16.msra.mxu0 0
        %956 = vmatprep.subr.bf16.mxu0 0
        %957 = vmatpush2.bf16.msra.mxu0 0
        %958 = vmatprep.subr.bf16.mxu0 0
        %959 = vmatpush2.bf16.msra.mxu0 0
        %960 = vmatprep.mubr.bf16.mxu0 0
        %961 = vmatmul.mubr.bf16.gmra.mxu0 %v926
        %v962 = vpop.f32.mrf.mxu0
        %v963 = vadd.f32 0.0, %v962
        %v964 = vpop.f32.mrf.mxu0
        %v965 = vpop.f32.mrf.mxu0
        %v966 = vpop.f32.mrf.mxu0
        %967 = vdwg.mxu0
        %v969 = vsel %vm872, %v922, 0
        %971 = vmatprep.subr.bf16.mxu0 0
        %972 = vmatpush1.bf16.msra.mxu0 0
        %973 = vmatprep.subr.bf16.mxu0 0
        %974 = vmatpush1.bf16.msra.mxu0 0
        %975 = vmatprep.subr.bf16.mxu0 0
        %976 = vmatpush1.bf16.msra.mxu0 0
        %977 = vmatprep.subr.bf16.mxu0 0
        %978 = vmatpush1.bf16.msra.mxu0 0
        %979 = vmatprep.subr.bf16.mxu0 0
        %980 = vmatpush1.bf16.msra.mxu0 0
        %981 = vmatprep.subr.bf16.mxu0 0
        %982 = vmatpush1.bf16.msra.mxu0 0
        %983 = vmatprep.subr.bf16.mxu0 0
        %984 = vmatpush1.bf16.msra.mxu0 0
        %985 = vmatprep.subr.bf16.mxu0 0
        %986 = vmatpush1.bf16.msra.mxu0 %v684
        %987 = vmatprep.subr.bf16.mxu0 0
        %988 = vmatpush2.bf16.msra.mxu0 0
        %989 = vmatprep.subr.bf16.mxu0 0
        %990 = vmatpush2.bf16.msra.mxu0 0
        %991 = vmatprep.subr.bf16.mxu0 0
        %992 = vmatpush2.bf16.msra.mxu0 0
        %993 = vmatprep.subr.bf16.mxu0 0
        %994 = vmatpush2.bf16.msra.mxu0 0
        %995 = vmatprep.subr.bf16.mxu0 0
        %996 = vmatpush2.bf16.msra.mxu0 0
        %997 = vmatprep.subr.bf16.mxu0 0
        %998 = vmatpush2.bf16.msra.mxu0 0
        %999 = vmatprep.subr.bf16.mxu0 0
        %1000 = vmatpush2.bf16.msra.mxu0 0
        %1001 = vmatprep.subr.bf16.mxu0 0
        %1002 = vmatpush2.bf16.msra.mxu0 0
        %1003 = vmatprep.mubr.bf16.mxu0 0
        %1004 = vmatmul.mubr.bf16.gmra.mxu0 %v969
        %v1005 = vpop.f32.mrf.mxu0
        %v1006 = vadd.f32 0.0, %v1005
        %v1007 = vpop.f32.mrf.mxu0
        %v1008 = vpop.f32.mrf.mxu0
        %v1009 = vpop.f32.mrf.mxu0
        %1010 = vdwg.mxu0
        %v1012 = vsel %vm872, %v923, 0
        %1014 = vmatprep.subr.bf16.mxu0 0
        %1015 = vmatpush1.bf16.msra.mxu0 0
        %1016 = vmatprep.subr.bf16.mxu0 0
        %1017 = vmatpush1.bf16.msra.mxu0 0
        %1018 = vmatprep.subr.bf16.mxu0 0
        %1019 = vmatpush1.bf16.msra.mxu0 0
        %1020 = vmatprep.subr.bf16.mxu0 0
        %1021 = vmatpush1.bf16.msra.mxu0 0
        %1022 = vmatprep.subr.bf16.mxu0 0
        %1023 = vmatpush1.bf16.msra.mxu0 0
        %1024 = vmatprep.subr.bf16.mxu0 0
        %1025 = vmatpush1.bf16.msra.mxu0 0
        %1026 = vmatprep.subr.bf16.mxu0 0
        %1027 = vmatpush1.bf16.msra.mxu0 0
        %1028 = vmatprep.subr.bf16.mxu0 0
        %1029 = vmatpush1.bf16.msra.mxu0 %v685
        %1030 = vmatprep.subr.bf16.mxu0 0
        %1031 = vmatpush2.bf16.msra.mxu0 0
        %1032 = vmatprep.subr.bf16.mxu0 0
        %1033 = vmatpush2.bf16.msra.mxu0 0
        %1034 = vmatprep.subr.bf16.mxu0 0
        %1035 = vmatpush2.bf16.msra.mxu0 0
        %1036 = vmatprep.subr.bf16.mxu0 0
        %1037 = vmatpush2.bf16.msra.mxu0 0
        %1038 = vmatprep.subr.bf16.mxu0 0
        %1039 = vmatpush2.bf16.msra.mxu0 0
        %1040 = vmatprep.subr.bf16.mxu0 0
        %1041 = vmatpush2.bf16.msra.mxu0 0
        %1042 = vmatprep.subr.bf16.mxu0 0
        %1043 = vmatpush2.bf16.msra.mxu0 0
        %1044 = vmatprep.subr.bf16.mxu0 0
        %1045 = vmatpush2.bf16.msra.mxu0 0
        %1046 = vmatprep.mubr.bf16.mxu0 0
        %1047 = vmatmul.mubr.bf16.gmra.mxu0 %v1012
        %v1048 = vpop.f32.mrf.mxu0
        %v1049 = vadd.f32 0.0, %v1048
        %v1050 = vpop.f32.mrf.mxu0
        %v1051 = vpop.f32.mrf.mxu0
        %v1052 = vpop.f32.mrf.mxu0
        %1053 = vdwg.mxu0
        %v1055 = vsel %vm872, %v924, 0
        %1057 = vmatprep.subr.bf16.mxu0 0
        %1058 = vmatpush1.bf16.msra.mxu0 0
        %1059 = vmatprep.subr.bf16.mxu0 0
        %1060 = vmatpush1.bf16.msra.mxu0 0
        %1061 = vmatprep.subr.bf16.mxu0 0
        %1062 = vmatpush1.bf16.msra.mxu0 0
        %1063 = vmatprep.subr.bf16.mxu0 0
        %1064 = vmatpush1.bf16.msra.mxu0 0
        %1065 = vmatprep.subr.bf16.mxu0 0
        %1066 = vmatpush1.bf16.msra.mxu0 0
        %1067 = vmatprep.subr.bf16.mxu0 0
        %1068 = vmatpush1.bf16.msra.mxu0 0
        %1069 = vmatprep.subr.bf16.mxu0 0
        %1070 = vmatpush1.bf16.msra.mxu0 0
        %1071 = vmatprep.subr.bf16.mxu0 0
        %1072 = vmatpush1.bf16.msra.mxu0 %v686
        %1073 = vmatprep.subr.bf16.mxu0 0
        %1074 = vmatpush2.bf16.msra.mxu0 0
        %1075 = vmatprep.subr.bf16.mxu0 0
        %1076 = vmatpush2.bf16.msra.mxu0 0
        %1077 = vmatprep.subr.bf16.mxu0 0
        %1078 = vmatpush2.bf16.msra.mxu0 0
        %1079 = vmatprep.subr.bf16.mxu0 0
        %1080 = vmatpush2.bf16.msra.mxu0 0
        %1081 = vmatprep.subr.bf16.mxu0 0
        %1082 = vmatpush2.bf16.msra.mxu0 0
        %1083 = vmatprep.subr.bf16.mxu0 0
        %1084 = vmatpush2.bf16.msra.mxu0 0
        %1085 = vmatprep.subr.bf16.mxu0 0
        %1086 = vmatpush2.bf16.msra.mxu0 0
        %1087 = vmatprep.subr.bf16.mxu0 0
        %1088 = vmatpush2.bf16.msra.mxu0 0
        %1089 = vmatprep.mubr.bf16.mxu0 0
        %1090 = vmatmul.mubr.bf16.gmra.mxu0 %v1055
        %v1091 = vpop.f32.mrf.mxu0
        %v1092 = vadd.f32 0.0, %v1091
        %v1093 = vpop.f32.mrf.mxu0
        %v1094 = vpop.f32.mrf.mxu0
        %v1095 = vpop.f32.mrf.mxu0
        %1096 = vdwg.mxu0
        %v1097 = vpack.c.bf16 %v963, %v963
        %v1098 = vpack.c.bf16 %v1006, %v1006
        %v1100 = vsel %vm687, %v1098, 0
        %vm1102 = vcmask 1043456
        %v1104 = vsel %vm1102, %v621, 0
        %1106 = vmatprep.subr.bf16.mxu0 0
        %1107 = vmatpush1.bf16.msra.mxu0 0
        %1108 = vmatprep.subr.bf16.mxu0 0
        %1109 = vmatpush1.bf16.msra.mxu0 0
        %1110 = vmatprep.subr.bf16.mxu0 0
        %1111 = vmatpush1.bf16.msra.mxu0 0
        %1112 = vmatprep.subr.bf16.mxu0 0
        %1113 = vmatpush1.bf16.msra.mxu0 0
        %1114 = vmatprep.subr.bf16.mxu0 0
        %1115 = vmatpush1.bf16.msra.mxu0 0
        %1116 = vmatprep.subr.bf16.mxu0 0
        %1117 = vmatpush1.bf16.msra.mxu0 0
        %1118 = vmatprep.subr.bf16.mxu0 0
        %1119 = vmatpush1.bf16.msra.mxu0 0
        %1120 = vmatprep.subr.bf16.mxu0 0
        %1121 = vmatpush1.bf16.msra.mxu0 %v1104
        %1122 = vmatprep.subr.bf16.mxu0 0
        %1123 = vmatpush2.bf16.msra.mxu0 0
        %1124 = vmatprep.subr.bf16.mxu0 0
        %1125 = vmatpush2.bf16.msra.mxu0 0
        %1126 = vmatprep.subr.bf16.mxu0 0
        %1127 = vmatpush2.bf16.msra.mxu0 0
        %1128 = vmatprep.subr.bf16.mxu0 0
        %1129 = vmatpush2.bf16.msra.mxu0 0
        %1130 = vmatprep.subr.bf16.mxu0 0
        %1131 = vmatpush2.bf16.msra.mxu0 0
        %1132 = vmatprep.subr.bf16.mxu0 0
        %1133 = vmatpush2.bf16.msra.mxu0 0
        %1134 = vmatprep.subr.bf16.mxu0 0
        %1135 = vmatpush2.bf16.msra.mxu0 0
        %1136 = vmatprep.subr.bf16.mxu0 0
        %1137 = vmatpush2.bf16.msra.mxu0 0
        %1138 = vmatprep.mubr.bf16.mxu0 0
        %1139 = vmatmul.mubr.bf16.gmra.mxu0 %v1100
        %v1140 = vpop.f32.mrf.mxu0
        %v1141 = vadd.f32 0.0, %v1140
        %v1142 = vpop.f32.mrf.mxu0
        %v1143 = vpop.f32.mrf.mxu0
        %v1144 = vpop.f32.mrf.mxu0
        %1145 = vdwg.mxu0
        %v1147 = vsel %vm687, %v1097, 0
        %v1150 = vsel %vm1102, %v620, 0
        %1152 = vmatprep.subr.bf16.mxu0 0
        %1153 = vmatpush1.bf16.msra.mxu0 0
        %1154 = vmatprep.subr.bf16.mxu0 0
        %1155 = vmatpush1.bf16.msra.mxu0 0
        %1156 = vmatprep.subr.bf16.mxu0 0
        %1157 = vmatpush1.bf16.msra.mxu0 0
        %1158 = vmatprep.subr.bf16.mxu0 0
        %1159 = vmatpush1.bf16.msra.mxu0 0
        %1160 = vmatprep.subr.bf16.mxu0 0
        %1161 = vmatpush1.bf16.msra.mxu0 0
        %1162 = vmatprep.subr.bf16.mxu0 0
        %1163 = vmatpush1.bf16.msra.mxu0 0
        %1164 = vmatprep.subr.bf16.mxu0 0
        %1165 = vmatpush1.bf16.msra.mxu0 0
        %1166 = vmatprep.subr.bf16.mxu0 0
        %1167 = vmatpush1.bf16.msra.mxu0 %v1150
        %1168 = vmatprep.subr.bf16.mxu0 0
        %1169 = vmatpush2.bf16.msra.mxu0 0
        %1170 = vmatprep.subr.bf16.mxu0 0
        %1171 = vmatpush2.bf16.msra.mxu0 0
        %1172 = vmatprep.subr.bf16.mxu0 0
        %1173 = vmatpush2.bf16.msra.mxu0 0
        %1174 = vmatprep.subr.bf16.mxu0 0
        %1175 = vmatpush2.bf16.msra.mxu0 0
        %1176 = vmatprep.subr.bf16.mxu0 0
        %1177 = vmatpush2.bf16.msra.mxu0 0
        %1178 = vmatprep.subr.bf16.mxu0 0
        %1179 = vmatpush2.bf16.msra.mxu0 0
        %1180 = vmatprep.subr.bf16.mxu0 0
        %1181 = vmatpush2.bf16.msra.mxu0 0
        %1182 = vmatprep.subr.bf16.mxu0 0
        %1183 = vmatpush2.bf16.msra.mxu0 0
        %1184 = vmatprep.mubr.bf16.mxu0 0
        %1185 = vmatmul.mubr.bf16.gmra.mxu0 %v1147
        %v1186 = vpop.f32.mrf.mxu0
        %v1187 = vadd.f32 %v1141, %v1186
        %v1188 = vpop.f32.mrf.mxu0
        %v1189 = vpop.f32.mrf.mxu0
        %v1190 = vpop.f32.mrf.mxu0
        %1191 = vdwg.mxu0
        %v1192 = vpack.c.bf16 %v1049, %v1049
        %v1194 = vsel %vm687, %v1192, 0
        %v1197 = vsel %vm1102, %v622, 0
        %1199 = vmatprep.subr.bf16.mxu0 0
        %1200 = vmatpush1.bf16.msra.mxu0 0
        %1201 = vmatprep.subr.bf16.mxu0 0
        %1202 = vmatpush1.bf16.msra.mxu0 0
        %1203 = vmatprep.subr.bf16.mxu0 0
        %1204 = vmatpush1.bf16.msra.mxu0 0
        %1205 = vmatprep.subr.bf16.mxu0 0
        %1206 = vmatpush1.bf16.msra.mxu0 0
        %1207 = vmatprep.subr.bf16.mxu0 0
        %1208 = vmatpush1.bf16.msra.mxu0 0
        %1209 = vmatprep.subr.bf16.mxu0 0
        %1210 = vmatpush1.bf16.msra.mxu0 0
        %1211 = vmatprep.subr.bf16.mxu0 0
        %1212 = vmatpush1.bf16.msra.mxu0 0
        %1213 = vmatprep.subr.bf16.mxu0 0
        %1214 = vmatpush1.bf16.msra.mxu0 %v1197
        %1215 = vmatprep.subr.bf16.mxu0 0
        %1216 = vmatpush2.bf16.msra.mxu0 0
        %1217 = vmatprep.subr.bf16.mxu0 0
        %1218 = vmatpush2.bf16.msra.mxu0 0
        %1219 = vmatprep.subr.bf16.mxu0 0
        %1220 = vmatpush2.bf16.msra.mxu0 0
        %1221 = vmatprep.subr.bf16.mxu0 0
        %1222 = vmatpush2.bf16.msra.mxu0 0
        %1223 = vmatprep.subr.bf16.mxu0 0
        %1224 = vmatpush2.bf16.msra.mxu0 0
        %1225 = vmatprep.subr.bf16.mxu0 0
        %1226 = vmatpush2.bf16.msra.mxu0 0
        %1227 = vmatprep.subr.bf16.mxu0 0
        %1228 = vmatpush2.bf16.msra.mxu0 0
        %1229 = vmatprep.subr.bf16.mxu0 0
        %1230 = vmatpush2.bf16.msra.mxu0 0
        %1231 = vmatprep.mubr.bf16.mxu0 0
        %1232 = vmatmul.mubr.bf16.gmra.mxu0 %v1194
        %v1233 = vpop.f32.mrf.mxu0
        %v1234 = vadd.f32 0.0, %v1233
        %v1235 = vpop.f32.mrf.mxu0
        %v1236 = vpop.f32.mrf.mxu0
        %v1237 = vpop.f32.mrf.mxu0
        %1238 = vdwg.mxu0
        %v1239 = vadd.f32 %v1187, %v1234
        %v1240 = vpack.c.bf16 %v1092, %v1092
        %v1242 = vsel %vm687, %v1240, 0
        %v1245 = vsel %vm1102, %v623, 0
        %1247 = vmatprep.subr.bf16.mxu0 0
        %1248 = vmatpush1.bf16.msra.mxu0 0
        %1249 = vmatprep.subr.bf16.mxu0 0
        %1250 = vmatpush1.bf16.msra.mxu0 0
        %1251 = vmatprep.subr.bf16.mxu0 0
        %1252 = vmatpush1.bf16.msra.mxu0 0
        %1253 = vmatprep.subr.bf16.mxu0 0
        %1254 = vmatpush1.bf16.msra.mxu0 0
        %1255 = vmatprep.subr.bf16.mxu0 0
        %1256 = vmatpush1.bf16.msra.mxu0 0
        %1257 = vmatprep.subr.bf16.mxu0 0
        %1258 = vmatpush1.bf16.msra.mxu0 0
        %1259 = vmatprep.subr.bf16.mxu0 0
        %1260 = vmatpush1.bf16.msra.mxu0 0
        %1261 = vmatprep.subr.bf16.mxu0 0
        %1262 = vmatpush1.bf16.msra.mxu0 %v1245
        %1263 = vmatprep.subr.bf16.mxu0 0
        %1264 = vmatpush2.bf16.msra.mxu0 0
        %1265 = vmatprep.subr.bf16.mxu0 0
        %1266 = vmatpush2.bf16.msra.mxu0 0
        %1267 = vmatprep.subr.bf16.mxu0 0
        %1268 = vmatpush2.bf16.msra.mxu0 0
        %1269 = vmatprep.subr.bf16.mxu0 0
        %1270 = vmatpush2.bf16.msra.mxu0 0
        %1271 = vmatprep.subr.bf16.mxu0 0
        %1272 = vmatpush2.bf16.msra.mxu0 0
        %1273 = vmatprep.subr.bf16.mxu0 0
        %1274 = vmatpush2.bf16.msra.mxu0 0
        %1275 = vmatprep.subr.bf16.mxu0 0
        %1276 = vmatpush2.bf16.msra.mxu0 0
        %1277 = vmatprep.subr.bf16.mxu0 0
        %1278 = vmatpush2.bf16.msra.mxu0 0
        %1279 = vmatprep.mubr.bf16.mxu0 0
        %1280 = vmatmul.mubr.bf16.gmra.mxu0 %v1242
        %v1281 = vpop.f32.mrf.mxu0
        %v1282 = vadd.f32 0.0, %v1281
        %v1283 = vpop.f32.mrf.mxu0
        %v1284 = vpop.f32.mrf.mxu0
        %v1285 = vpop.f32.mrf.mxu0
        %1286 = vdwg.mxu0
        %v1287 = vadd.f32 %v1239, %v1282
        %v1289 = vlaneseq
        %v1290 = vshrl.u32 %v1289, 7
        %v1291 = vsub.s32 0, %v1290
        %v1292 = vrot.slane %v624, %v1291
        %v1294 = vadd.f32 %v1287, %v1292
        %1295 = vst.msk [vmem:[%s430] sm:$0xff] %vm470, %v1294
        %s1296 = sand.u32 %s203, 1
        %s1297 = scalar_lea.sflag [#allocation4], %s1296
        %s1298 = sand.u32 %s203, 1
        %s1299 = smul.addr %s1298, 8
        %s1300 = scalar_lea.vmem [#allocation11], %s1299
        %s1301 = sand.u32 %s229, 1
        %s1302 = scalar_lea.sflag [#allocation13], %s1301
        %s1303 = sand.u32 %s229, 1
        %s1304 = smul.addr %s1303, 32
        %s1305 = scalar_lea.vmem [#allocation12], %s1304
        // Predicated region
        $region69: #{tpu_custom_call.1} parent=47 // pred_check
          %p1306 = pneg %p213
        $region70: #{tpu_custom_call.1} parent=47 // pred_check_branch
          %1308 = sbr.rel (%p1306) target = $region72
        $region71: #{tpu_custom_call.1} parent=47 // pred_region
          %s1310 = ssub.s32 128, 128
          %1311 = vsyncadd %s1297, %s1310
          %s1312 = smul.addr %s33, 128
          %s1313 = scalar_lea.hbm %s7, %s1312
          %s1315 = sshll.u32 %s1300, 4
          %s1316 = int_to_ptr.vmem [resolvable:$true] %s1315
          %1318 = dma.vmem_to_hbm [thread:$0]  %s1316, 128, %s1313, %s1297
        $region72: #{tpu_custom_call.1} parent=47 // pred_fallthru
          _
        // Predicated region
        $region73: #{tpu_custom_call.1} parent=47 // pred_check
          %p1319 = pneg %p239
        $region74: #{tpu_custom_call.1} parent=47 // pred_check_branch
          %1321 = sbr.rel (%p1319) target = $region76
        $region75: #{tpu_custom_call.1} parent=47 // pred_region
          %s1323 = ssub.s32 512, 512
          %1324 = vsyncadd %s1302, %s1323
          %s1325 = smul.addr %s33, 4
          %s1326 = smul.addr %s1325, 128
          %s1327 = scalar_lea.hbm %s8, %s1326
          %s1328 = sshll.u32 %s1305, 4
          %s1329 = int_to_ptr.vmem [resolvable:$true] %s1328
          %1334 = dma.vmem_to_hbm [thread:$0]  %s1329, 512, %s1327, %s1302, 128, 128, 8
        $region76: #{tpu_custom_call.1} parent=47 // pred_fallthru
          _
      $region48: #{tpu_custom_call.1} parent=5 // pred_fallthru
        _
      %p1335 = scmp.le.s32.totalorder 2, %s28
      // Predicated region
      $region77: #{tpu_custom_call.1} parent=5 // pred_check
        %p1336 = pneg %p1335
      $region78: #{tpu_custom_call.1} parent=5 // pred_check_branch
        %1338 = sbr.rel (%p1336) target = $region80
      $region79: #{tpu_custom_call.1} parent=5 // pred_region
        %s1339 = ssub.s32 %s28, 2
        // Predicated region
        $region81: #{tpu_custom_call.1} parent=79 // pred_check
          %p1340 = pneg %p219
        $region82: #{tpu_custom_call.1} parent=79 // pred_check_branch
          %1342 = sbr.rel (%p1340) target = $region84
        $region83: #{tpu_custom_call.1} parent=79 // pred_region
          %s1343 = sand.u32 %s204, 1
          %s1344 = scalar_lea.sflag [#allocation4], %s1343
          %s1345 = sand.u32 %s204, 1
          %s1346 = smul.addr %s1345, 8
          %s1347 = scalar_lea.vmem [#allocation11], %s1346
          %1348 = dma.done %s1344, 128
        $region84: #{tpu_custom_call.1} parent=79 // pred_fallthru
          _
        // Predicated region
        $region85: #{tpu_custom_call.1} parent=79 // pred_check
          %p1349 = pneg %p245
        $region86: #{tpu_custom_call.1} parent=79 // pred_check_branch
          %1351 = sbr.rel (%p1349) target = $region88
        $region87: #{tpu_custom_call.1} parent=79 // pred_region
          %s1352 = sand.u32 %s230, 1
          %s1353 = scalar_lea.sflag [#allocation13], %s1352
          %s1354 = sand.u32 %s230, 1
          %s1355 = smul.addr %s1354, 32
          %s1356 = scalar_lea.vmem [#allocation12], %s1355
          %1357 = dma.done %s1353, 512
        $region88: #{tpu_custom_call.1} parent=79 // pred_fallthru
          _
      $region80: #{tpu_custom_call.1} parent=5 // pred_fallthru
        _
    $region6: #{tpu_custom_call.1} parent=1 // loop_footer
      %s32 = sadd.s32 1, %s28
    $region7: #{tpu_custom_call.1} parent=1 // loop_footer_branch
      %27 = sbr.rel target = $region3
    $region8: #{tpu_custom_call.1} parent=1 // loop_exit
      _
    %1358 = vsyncpa [#allocation3], 1
    %s1359 = scalar_lea.sflag [#allocation3], 1
    %1360 = vsyncpa %s1359, 1
    %1361 = vsyncpa [#allocation6], 1
    %s1362 = scalar_lea.sflag [#allocation6], 1
    %1363 = vsyncpa %s1362, 1
    %1364 = vsyncpa [#allocation9], 1
    %1365 = vsyncpa [#allocation4], 1
    %s1366 = scalar_lea.sflag [#allocation4], 1
    %1367 = vsyncpa %s1366, 1
    %1368 = vsyncpa [#allocation13], 1
    %s1369 = scalar_lea.sflag [#allocation13], 1
    %1370 = vsyncpa %s1369, 1

</llo_original>
